<compile_context>
chip_gen: v6e
topology: v6e:2x2x1
jax: 0.10.0
libtpu: 0.0.40
codegen_flags: <defaults>
</compile_context>

<pallas_src>
import functools

import jax
import jax.numpy as jnp
import numpy as np
from jax import lax
from jax.experimental import pallas as pl
from jax.experimental.pallas import tpu as pltpu


def _layer_norm(v, g, b, eps=1e-5):
    mu = jnp.mean(v, axis=-1, keepdims=True)
    c = v - mu
    var = jnp.mean(c * c, axis=-1, keepdims=True)
    return c * lax.rsqrt(var + eps) * g + b


# ----------------------------------------------------------------------------
# Pallas kernel: one (batch, query-tile) step of the full decoder layer.
# ----------------------------------------------------------------------------
def _decoder_layer_kernel(
    x_all_ref,                 # (1, S, D)  f32  full sequence (for K/V)
    x_q_ref,                   # (1, TQ, D) f32  this step's query rows
    ln1_g_ref, ln1_b_ref,      # (1, D) f32
    wq_ref, bq_ref,            # (D, D) bf16 (scale folded in), (1, D) f32
    wkv_ref, bkv_ref,          # (D, 2D) bf16, (1, 2D) f32
    wo_ref, bo_ref,            # (D, D) bf16, (1, D) f32
    wg_ref, bg_ref,            # (D, D) bf16, (1, D) f32   highway gate
    ln2_g_ref, ln2_b_ref,      # (1, D) f32
    w12_ref, b12_ref,          # (D, 2E) bf16 [W1|W2], (1, 2E) f32
    w3_ref, b3_ref,            # (E, D) bf16, (1, D) f32
    out_ref,                   # (1, TQ, D)
    *,
    num_heads: int,
):
    bf16 = jnp.bfloat16
    f32 = jnp.float32

    x_all = x_all_ref[0]                      # (S, D)  f32
    x_q = x_q_ref[0]                          # (TQ, D) f32
    S, D = x_all.shape
    TQ = x_q.shape[0]
    H = num_heads
    hd = D // H
    E = w3_ref.shape[0]
    q_start = pl.program_id(1) * TQ           # absolute row of this query tile

    # ---------------- LN1 + fused projections (lane-dense 2-D matmuls) -------
    h_kv = _layer_norm(x_all, ln1_g_ref[0], ln1_b_ref[0]).astype(bf16)   # (S, D)
    h_q = _layer_norm(x_q, ln1_g_ref[0], ln1_b_ref[0]).astype(bf16)      # (TQ, D)

    # 1/sqrt(hd) already folded into Wq/bq -> no score multiply later.
    q = jnp.dot(h_q, wq_ref[...], preferred_element_type=f32) + bq_ref[0]      # (TQ, D)
    kv = jnp.dot(h_kv, wkv_ref[...], preferred_element_type=f32) + bkv_ref[0]  # (S, 2D)

    # ---------------- causal attention ---------------------------------------
    # Select-based mask built once, reused by every head (no (S,S) f32 slab).
    pos_q = lax.broadcasted_iota(jnp.int32, (TQ, S), 0) + q_start
    pos_k = lax.broadcasted_iota(jnp.int32, (TQ, S), 1)
    causal = pos_q >= pos_k                                                # (TQ, S)

    # Heads are carved by static lane slices; each head is a pair of 2-D MXU
    # calls and its output projection is accumulated straight into an (TQ, D)
    # f32 slab -- no (H, S, D) intermediate, no concat.
    # TODO(synk): at production S, tile the KV axis here (online softmax) and
    # skip fully-masked KV tiles.
    h_attn = jnp.zeros((TQ, D), f32)
    for hh in range(H):
        lo = hh * hd
        qh = q[:, lo:lo + hd].astype(bf16)                  # (TQ, hd)
        kh = kv[:, lo:lo + hd].astype(bf16)                 # (S, hd)
        vh = kv[:, D + lo:D + lo + hd].astype(bf16)         # (S, hd)

        s = jnp.einsum("qd,kd->qk", qh, kh, preferred_element_type=f32)  # (TQ, S)
        s = jnp.where(causal, s, -1e30)
        s = s - jnp.max(s, axis=-1, keepdims=True)
        p = jnp.exp(s)
        p = p * pl.reciprocal(jnp.sum(p, axis=-1, keepdims=True), approx=True)

        ctx = jnp.dot(p.astype(bf16), vh, preferred_element_type=f32)    # (TQ, hd)
        h_attn = h_attn + jnp.dot(ctx.astype(bf16), wo_ref[lo:lo + hd, :],
                                  preferred_element_type=f32)            # (TQ, D)
    h_attn = h_attn + bo_ref[0]

    # ---------------- HighwayResidual: x + g * (h_attn - x) ------------------
    gate = jax.nn.sigmoid(
        jnp.dot(x_q.astype(bf16), wg_ref[...], preferred_element_type=f32) + bg_ref[0])
    x2 = x_q + gate * (h_attn - x_q)

    # ---------------- LN2 + SwiGLU FFN + residual -----------------------------
    # TODO(synk): the module docstring mentions ReZeroResidual for the FFN
    # branch, but forward() does a plain residual add, which we match.
    h2 = _layer_norm(x2, ln2_g_ref[0], ln2_b_ref[0]).astype(bf16)
    ab = jnp.dot(h2, w12_ref[...], preferred_element_type=f32) + b12_ref[0]   # (TQ, 2E)
    a = ab[:, :E]
    b = ab[:, E:]
    ffn = jnp.dot((a * jax.nn.sigmoid(a) * b).astype(bf16), w3_ref[...],
                  preferred_element_type=f32) + b3_ref[0]

    out_ref[0] = (x2 + ffn).astype(out_ref.dtype)


# ----------------------------------------------------------------------------
# Weight repacking -- done ONCE, outside the per-call path.
# ----------------------------------------------------------------------------
def pack_decoder_params(params, num_heads):
    f32, bf16 = jnp.float32, jnp.bfloat16
    D = params["wo"].shape[0]
    hd = D // num_heads
    assert D % num_heads == 0
    assert params["wqkv"].shape == (D, 3 * D)          # columns are [Q | K | V]
    scale = 1.0 / float(np.sqrt(hd))
    wqkv = params["wqkv"]
    bqkv = params["bqkv"]
    return {
        "ln1_g": params["ln1_g"].astype(f32),
        "ln1_b": params["ln1_b"].astype(f32),
        # fold the softmax 1/sqrt(hd) into the Q projection (weights + bias)
        "wq": (wqkv[:, :D] * scale).astype(bf16),
        "bq": (bqkv[:, :D] * scale).astype(f32),
        "wkv": wqkv[:, D:].astype(bf16),               # (D, 2D)  [K | V]
        "bkv": bqkv[:, D:].astype(f32),
        "wo": params["wo"].astype(bf16),
        "bo": params["bo"].astype(f32),
        "wg": params["wg"].astype(bf16),
        "bg": params["bg"].astype(f32),
        "ln2_g": params["ln2_g"].astype(f32),
        "ln2_b": params["ln2_b"].astype(f32),
        "w12": jnp.concatenate([params["w1"], params["w2"]], axis=1).astype(bf16),  # (D, 2E)
        "b12": jnp.concatenate([params["b1"], params["b2"]], axis=1).astype(f32),   # (1, 2E)
        "w3": params["w3"].astype(bf16),
        "b3": params["b3"].astype(f32),
    }


def _pick_vmem_limit():
    # Raise above the 32 MiB default where the chip allows it (v5e/v6e have
    # 128 MiB physical); stay well under the 64 MiB physical VMEM of v7x.
    try:
        cap = pltpu.get_tpu_info().vmem_capacity_bytes
    except Exception:
        cap = 64 * 1024 * 1024
    return min(96 * 1024 * 1024, (cap * 3) // 4)


# ----------------------------------------------------------------------------
# Wrapper
# ----------------------------------------------------------------------------
def decoder_layer(x, pp, num_heads, *, q_tile=None):
    B, S, D = x.shape
    E = pp["w3"].shape[0]
    if q_tile is None:
        q_tile = S if S <= 256 else 256
    TQ = min(q_tile, S)
    assert S % TQ == 0 and (TQ == S or TQ % 8 == 0)
    NQ = S // TQ

    def rep(shape):
        nd = len(shape)
        return pl.BlockSpec(shape, lambda b, qi: (0,) * nd)   # same block every step

    in_specs = [
        pl.BlockSpec((1, S, D), lambda b, qi: (b, 0, 0)),     # x (full seq, K/V path)
        pl.BlockSpec((1, TQ, D), lambda b, qi: (b, qi, 0)),   # x (query-tile rows)
        rep((1, D)), rep((1, D)),                             # ln1 gamma / beta
        rep((D, D)), rep((1, D)),                             # Wq (scaled), bq
        rep((D, 2 * D)), rep((1, 2 * D)),                     # Wkv, bkv
        rep((D, D)), rep((1, D)),                             # Wo, bo
        rep((D, D)), rep((1, D)),                             # Wg, bg
        rep((1, D)), rep((1, D)),                             # ln2 gamma / beta
        rep((D, 2 * E)), rep((1, 2 * E)),                     # [W1|W2], [b1|b2]
        rep((E, D)), rep((1, D)),                             # W3, b3
    ]
    out_spec = pl.BlockSpec((1, TQ, D), lambda b, qi: (b, qi, 0))

    # Advisory cost estimate (weights streamed once, activations read/written once).
    flops_per_b = 2 * S * (5 * D * D + 2 * S * D + 3 * D * E)
    transc_per_b = num_heads * S * S + S * (D + E) + num_heads * S
    weight_bytes = (5 * D * D + 3 * D * E) * 2              # bf16, fetched once
    cost = pl.CostEstimate(
        flops=B * flops_per_b,
        transcendentals=B * transc_per_b,
        bytes_accessed=2 * B * S * D * 4 + weight_bytes,
    )

    kernel = functools.partial(_decoder_layer_kernel, num_heads=num_heads)

    return pl.pallas_call(
        kernel,
        out_shape=jax.ShapeDtypeStruct((B, S, D), x.dtype),
        grid_spec=pltpu.PrefetchScalarGridSpec(
            num_scalar_prefetch=0,
            grid=(B, NQ),
            in_specs=in_specs,
            out_specs=out_spec,
        ),
        compiler_params=pltpu.CompilerParams(
            dimension_semantics=("parallel", "parallel"),    # no reduction grid axes
            vmem_limit_bytes=_pick_vmem_limit(),
        ),
        cost_estimate=cost,
    )(
        x, x,
        pp["ln1_g"], pp["ln1_b"],
        pp["wq"], pp["bq"],
        pp["wkv"], pp["bkv"],
        pp["wo"], pp["bo"],
        pp["wg"], pp["bg"],
        pp["ln2_g"], pp["ln2_b"],
        pp["w12"], pp["b12"],
        pp["w3"], pp["b3"],
    )


# ----------------------------------------------------------------------------
# Pure-JAX reference (mirrors the kernel's bf16-matmul / f32-accumulate numerics)
# ----------------------------------------------------------------------------
def decoder_layer_ref(x, p, num_heads):
    B, S, D = x.shape
    H = num_heads
    hd = D // H
    bf16 = jnp.bfloat16

    def mm(a, w):
        return jnp.dot(a.astype(bf16), w.astype(bf16),
                       preferred_element_type=jnp.float32)

    def ln(v, g, b):
        mu = v.mean(-1, keepdims=True)
        var = ((v - mu) ** 2).mean(-1, keepdims=True)
        return (v - mu) / jnp.sqrt(var + 1e-5) * g[0] + b[0]

    h = ln(x, p["ln1_g"], p["ln1_b"])
    qkv = mm(h, p["wqkv"]) + p["bqkv"][0]
    q, k, v = jnp.split(qkv, 3, axis=-1)
    q = q * (1.0 / np.sqrt(hd))       # kernel folds this scale into Wq
    q = q.reshape(B, S, H, hd).transpose(0, 2, 1, 3)
    k = k.reshape(B, S, H, hd).transpose(0, 2, 1, 3)
    v = v.reshape(B, S, H, hd).transpose(0, 2, 1, 3)
    scores = jnp.einsum("bhqd,bhkd->bhqk", q.astype(bf16), k.astype(bf16),
                        preferred_element_type=jnp.float32)
    mask = jnp.tril(jnp.ones((S, S), bool))
    scores = jnp.where(mask, scores, -1e30)
    attn = jax.nn.softmax(scores, axis=-1)
    o = jnp.einsum("bhqk,bhkd->bhqd", attn.astype(bf16), v.astype(bf16),
                   preferred_element_type=jnp.float32)
    o = o.transpose(0, 2, 1, 3).reshape(B, S, D)
    h_attn = mm(o, p["wo"]) + p["bo"][0]
    gate = jax.nn.sigmoid(mm(x, p["wg"]) + p["bg"][0])
    x2 = gate * h_attn + (1.0 - gate) * x
    h2 = ln(x2, p["ln2_g"], p["ln2_b"])
    a = mm(h2, p["w1"]) + p["b1"][0]
    b = mm(h2, p["w2"]) + p["b2"][0]
    ffn = mm(jax.nn.silu(a) * b, p["w3"]) + p["b3"][0]
    return x2 + ffn


# ----------------------------------------------------------------------------
# Main
# ----------------------------------------------------------------------------
if __name__ == "__main__":
    B, S, D = 2, 8, 32
    NUM_HEADS = 4
    EXPANSION = 4
    E = EXPANSION * D

    key = jax.random.PRNGKey(0)
    keys = jax.random.split(key, 16)

    def init(k, shape, scale=0.02):
        return (scale * jax.random.normal(k, shape)).astype(jnp.float32)

    params = {
        "ln1_g": jnp.ones((1, D), jnp.float32),
        "ln1_b": jnp.zeros((1, D), jnp.float32),
        "wqkv": init(keys[0], (D, 3 * D)),
        "bqkv": init(keys[1], (1, 3 * D)),
        "wo":   init(keys[2], (D, D)),
        "bo":   init(keys[3], (1, D)),
        "wg":   init(keys[4], (D, D)),
        "bg":   init(keys[5], (1, D)),
        "ln2_g": jnp.ones((1, D), jnp.float32),
        "ln2_b": jnp.zeros((1, D), jnp.float32),
        "w1":   init(keys[6], (D, E)),
        "b1":   init(keys[7], (1, E)),
        "w2":   init(keys[8], (D, E)),
        "b2":   init(keys[9], (1, E)),
        "w3":   init(keys[10], (E, D)),
        "b3":   init(keys[11], (1, D)),
    }

    x = jax.random.normal(keys[12], (B, S, D), jnp.float32)

    packed = pack_decoder_params(params, NUM_HEADS)   # once, outside the call path

    out = jax.block_until_ready(decoder_layer(x, packed, NUM_HEADS))
    ref = jax.block_until_ready(decoder_layer_ref(x, params, NUM_HEADS))

    np.testing.assert_allclose(np.asarray(out), np.asarray(ref), rtol=5e-3, atol=5e-3)

    print("KERNEL_OK")
</pallas_src>

<mosaic_0001>
module attributes {stable_mosaic.version = 11 : i64} {
  func.func @_decoder_layer_kernel(%arg0: i32, %arg1: i32, %arg2: memref<1x8x32xf32, #tpu.memory_space<vmem>>, %arg3: memref<1x8x32xf32, #tpu.memory_space<vmem>>, %arg4: memref<1x32xf32, #tpu.memory_space<vmem>>, %arg5: memref<1x32xf32, #tpu.memory_space<vmem>>, %arg6: memref<32x32xbf16, #tpu.memory_space<vmem>>, %arg7: memref<1x32xf32, #tpu.memory_space<vmem>>, %arg8: memref<32x64xbf16, #tpu.memory_space<vmem>>, %arg9: memref<1x64xf32, #tpu.memory_space<vmem>>, %arg10: memref<32x32xbf16, #tpu.memory_space<vmem>>, %arg11: memref<1x32xf32, #tpu.memory_space<vmem>>, %arg12: memref<32x32xbf16, #tpu.memory_space<vmem>>, %arg13: memref<1x32xf32, #tpu.memory_space<vmem>>, %arg14: memref<1x32xf32, #tpu.memory_space<vmem>>, %arg15: memref<1x32xf32, #tpu.memory_space<vmem>>, %arg16: memref<32x256xbf16, #tpu.memory_space<vmem>>, %arg17: memref<1x256xf32, #tpu.memory_space<vmem>>, %arg18: memref<128x32xbf16, #tpu.memory_space<vmem>>, %arg19: memref<1x32xf32, #tpu.memory_space<vmem>>, %arg20: memref<1x8x32xf32, #tpu.memory_space<vmem>>) attributes {dimension_semantics = [#tpu.dimension_semantics<parallel>, #tpu.dimension_semantics<parallel>], iteration_bounds = array<i64: 2, 1>, scalar_prefetch = 0 : i64, scratch_operands = 0 : i64, tpu.core_type = #tpu.core_type<tc>, window_params = [{transform_indices = @transform_0, window_bounds = array<i64: 1, 8, 32>}, {transform_indices = @transform_1, window_bounds = array<i64: 1, 8, 32>}, {pipeline_mode = #tpu.pipeline_mode<synchronous>, transform_indices = @transform_2, window_bounds = array<i64: 1, 32>}, {pipeline_mode = #tpu.pipeline_mode<synchronous>, transform_indices = @transform_3, window_bounds = array<i64: 1, 32>}, {pipeline_mode = #tpu.pipeline_mode<synchronous>, transform_indices = @transform_4, window_bounds = array<i64: 32, 32>}, {pipeline_mode = #tpu.pipeline_mode<synchronous>, transform_indices = @transform_5, window_bounds = array<i64: 1, 32>}, {pipeline_mode = #tpu.pipeline_mode<synchronous>, transform_indices = @transform_6, window_bounds = array<i64: 32, 64>}, {pipeline_mode = #tpu.pipeline_mode<synchronous>, transform_indices = @transform_7, window_bounds = array<i64: 1, 64>}, {pipeline_mode = #tpu.pipeline_mode<synchronous>, transform_indices = @transform_8, window_bounds = array<i64: 32, 32>}, {pipeline_mode = #tpu.pipeline_mode<synchronous>, transform_indices = @transform_9, window_bounds = array<i64: 1, 32>}, {pipeline_mode = #tpu.pipeline_mode<synchronous>, transform_indices = @transform_10, window_bounds = array<i64: 32, 32>}, {pipeline_mode = #tpu.pipeline_mode<synchronous>, transform_indices = @transform_11, window_bounds = array<i64: 1, 32>}, {pipeline_mode = #tpu.pipeline_mode<synchronous>, transform_indices = @transform_12, window_bounds = array<i64: 1, 32>}, {pipeline_mode = #tpu.pipeline_mode<synchronous>, transform_indices = @transform_13, window_bounds = array<i64: 1, 32>}, {pipeline_mode = #tpu.pipeline_mode<synchronous>, transform_indices = @transform_14, window_bounds = array<i64: 32, 256>}, {pipeline_mode = #tpu.pipeline_mode<synchronous>, transform_indices = @transform_15, window_bounds = array<i64: 1, 256>}, {pipeline_mode = #tpu.pipeline_mode<synchronous>, transform_indices = @transform_16, window_bounds = array<i64: 128, 32>}, {pipeline_mode = #tpu.pipeline_mode<synchronous>, transform_indices = @transform_17, window_bounds = array<i64: 1, 32>}, {transform_indices = @transform_18, window_bounds = array<i64: 1, 8, 32>}]} {
    %c0 = arith.constant 0 : index
    %c0_0 = arith.constant 0 : index
    %c0_1 = arith.constant 0 : index
    %0 = vector.load %arg2[%c0, %c0_0, %c0_1] : memref<1x8x32xf32, #tpu.memory_space<vmem>>, vector<1x8x32xf32>
    %1 = vector.shape_cast %0 : vector<1x8x32xf32> to vector<8x32xf32>
    %c0_2 = arith.constant 0 : index
    %c0_3 = arith.constant 0 : index
    %c0_4 = arith.constant 0 : index
    %2 = vector.load %arg3[%c0_2, %c0_3, %c0_4] : memref<1x8x32xf32, #tpu.memory_space<vmem>>, vector<1x8x32xf32>
    %3 = vector.shape_cast %2 : vector<1x8x32xf32> to vector<8x32xf32>
    %c8_i32 = arith.constant 8 : i32
    %4 = arith.muli %arg1, %c8_i32 : i32
    %c0_5 = arith.constant 0 : index
    %c0_6 = arith.constant 0 : index
    %5 = vector.load %arg4[%c0_5, %c0_6] : memref<1x32xf32, #tpu.memory_space<vmem>>, vector<1x32xf32>
    %6 = vector.shape_cast %5 : vector<1x32xf32> to vector<32xf32>
    %c0_7 = arith.constant 0 : index
    %c0_8 = arith.constant 0 : index
    %7 = vector.load %arg5[%c0_7, %c0_8] : memref<1x32xf32, #tpu.memory_space<vmem>>, vector<1x32xf32>
    %8 = vector.shape_cast %7 : vector<1x32xf32> to vector<32xf32>
    %cst = arith.constant dense<0.000000e+00> : vector<8xf32>
    %9 = vector.multi_reduction <add>, %1, %cst [1] : vector<8x32xf32> to vector<8xf32>
    %10 = vector.shape_cast %9 : vector<8xf32> to vector<8x1xf32>
    %cst_9 = arith.constant 3.200000e+01 : f32
    %11 = vector.broadcast %cst_9 : f32 to vector<8x1xf32>
    %12 = arith.divf %10, %11 : vector<8x1xf32>
    %13 = vector.broadcast %12 : vector<8x1xf32> to vector<8x32xf32>
    %14 = arith.subf %1, %13 : vector<8x32xf32>
    %15 = arith.mulf %14, %14 : vector<8x32xf32>
    %cst_10 = arith.constant dense<0.000000e+00> : vector<8xf32>
    %16 = vector.multi_reduction <add>, %15, %cst_10 [1] : vector<8x32xf32> to vector<8xf32>
    %17 = vector.shape_cast %16 : vector<8xf32> to vector<8x1xf32>
    %cst_11 = arith.constant 3.200000e+01 : f32
    %18 = vector.broadcast %cst_11 : f32 to vector<8x1xf32>
    %19 = arith.divf %17, %18 : vector<8x1xf32>
    %cst_12 = arith.constant 9.99999974E-6 : f32
    %20 = vector.broadcast %cst_12 : f32 to vector<8x1xf32>
    %21 = arith.addf %19, %20 : vector<8x1xf32>
    %22 = math.rsqrt %21 : vector<8x1xf32>
    %23 = vector.broadcast %22 : vector<8x1xf32> to vector<8x32xf32>
    %24 = arith.mulf %14, %23 : vector<8x32xf32>
    %25 = vector.shape_cast %6 : vector<32xf32> to vector<1x32xf32>
    %26 = vector.broadcast %25 : vector<1x32xf32> to vector<8x32xf32>
    %27 = arith.mulf %24, %26 : vector<8x32xf32>
    %28 = vector.shape_cast %8 : vector<32xf32> to vector<1x32xf32>
    %29 = vector.broadcast %28 : vector<1x32xf32> to vector<8x32xf32>
    %30 = arith.addf %27, %29 : vector<8x32xf32>
    %31 = arith.truncf %30 : vector<8x32xf32> to vector<8x32xbf16>
    %c0_13 = arith.constant 0 : index
    %c0_14 = arith.constant 0 : index
    %32 = vector.load %arg4[%c0_13, %c0_14] : memref<1x32xf32, #tpu.memory_space<vmem>>, vector<1x32xf32>
    %33 = vector.shape_cast %32 : vector<1x32xf32> to vector<32xf32>
    %c0_15 = arith.constant 0 : index
    %c0_16 = arith.constant 0 : index
    %34 = vector.load %arg5[%c0_15, %c0_16] : memref<1x32xf32, #tpu.memory_space<vmem>>, vector<1x32xf32>
    %35 = vector.shape_cast %34 : vector<1x32xf32> to vector<32xf32>
    %cst_17 = arith.constant dense<0.000000e+00> : vector<8xf32>
    %36 = vector.multi_reduction <add>, %3, %cst_17 [1] : vector<8x32xf32> to vector<8xf32>
    %37 = vector.shape_cast %36 : vector<8xf32> to vector<8x1xf32>
    %cst_18 = arith.constant 3.200000e+01 : f32
    %38 = vector.broadcast %cst_18 : f32 to vector<8x1xf32>
    %39 = arith.divf %37, %38 : vector<8x1xf32>
    %40 = vector.broadcast %39 : vector<8x1xf32> to vector<8x32xf32>
    %41 = arith.subf %3, %40 : vector<8x32xf32>
    %42 = arith.mulf %41, %41 : vector<8x32xf32>
    %cst_19 = arith.constant dense<0.000000e+00> : vector<8xf32>
    %43 = vector.multi_reduction <add>, %42, %cst_19 [1] : vector<8x32xf32> to vector<8xf32>
    %44 = vector.shape_cast %43 : vector<8xf32> to vector<8x1xf32>
    %cst_20 = arith.constant 3.200000e+01 : f32
    %45 = vector.broadcast %cst_20 : f32 to vector<8x1xf32>
    %46 = arith.divf %44, %45 : vector<8x1xf32>
    %cst_21 = arith.constant 9.99999974E-6 : f32
    %47 = vector.broadcast %cst_21 : f32 to vector<8x1xf32>
    %48 = arith.addf %46, %47 : vector<8x1xf32>
    %49 = math.rsqrt %48 : vector<8x1xf32>
    %50 = vector.broadcast %49 : vector<8x1xf32> to vector<8x32xf32>
    %51 = arith.mulf %41, %50 : vector<8x32xf32>
    %52 = vector.shape_cast %33 : vector<32xf32> to vector<1x32xf32>
    %53 = vector.broadcast %52 : vector<1x32xf32> to vector<8x32xf32>
    %54 = arith.mulf %51, %53 : vector<8x32xf32>
    %55 = vector.shape_cast %35 : vector<32xf32> to vector<1x32xf32>
    %56 = vector.broadcast %55 : vector<1x32xf32> to vector<8x32xf32>
    %57 = arith.addf %54, %56 : vector<8x32xf32>
    %58 = arith.truncf %57 : vector<8x32xf32> to vector<8x32xbf16>
    %c0_22 = arith.constant 0 : index
    %c0_23 = arith.constant 0 : index
    %59 = vector.load %arg6[%c0_22, %c0_23] : memref<32x32xbf16, #tpu.memory_space<vmem>>, vector<32x32xbf16>
    %cst_24 = arith.constant dense<0.000000e+00> : vector<8x32xf32>
    %60 = tpu.matmul %58, %59, %cst_24 {dimension_numbers = #tpu.dot_dimension_numbers<[1], [0], [0], [1], [0, 0, 1, 1], [], []>} : vector<8x32xbf16>, vector<32x32xbf16>, vector<8x32xf32> -> vector<8x32xf32>
    %c0_25 = arith.constant 0 : index
    %c0_26 = arith.constant 0 : index
    %61 = vector.load %arg7[%c0_25, %c0_26] : memref<1x32xf32, #tpu.memory_space<vmem>>, vector<1x32xf32>
    %62 = vector.shape_cast %61 : vector<1x32xf32> to vector<32xf32>
    %63 = vector.shape_cast %62 : vector<32xf32> to vector<1x32xf32>
    %64 = vector.broadcast %63 : vector<1x32xf32> to vector<8x32xf32>
    %65 = arith.addf %60, %64 : vector<8x32xf32>
    %c0_27 = arith.constant 0 : index
    %c0_28 = arith.constant 0 : index
    %66 = vector.load %arg8[%c0_27, %c0_28] : memref<32x64xbf16, #tpu.memory_space<vmem>>, vector<32x64xbf16>
    %cst_29 = arith.constant dense<0.000000e+00> : vector<8x64xf32>
    %67 = tpu.matmul %31, %66, %cst_29 {dimension_numbers = #tpu.dot_dimension_numbers<[1], [0], [0], [1], [0, 0, 1, 1], [], []>} : vector<8x32xbf16>, vector<32x64xbf16>, vector<8x64xf32> -> vector<8x64xf32>
    %c0_30 = arith.constant 0 : index
    %c0_31 = arith.constant 0 : index
    %68 = vector.load %arg9[%c0_30, %c0_31] : memref<1x64xf32, #tpu.memory_space<vmem>>, vector<1x64xf32>
    %69 = vector.shape_cast %68 : vector<1x64xf32> to vector<64xf32>
    %70 = vector.shape_cast %69 : vector<64xf32> to vector<1x64xf32>
    %71 = vector.broadcast %70 : vector<1x64xf32> to vector<8x64xf32>
    %72 = arith.addf %67, %71 : vector<8x64xf32>
    %73 = tpu.iota {dimensions = array<i32: 0>} : vector<8x8xi32>
    %74 = vector.broadcast %4 : i32 to vector<8x8xi32>
    %75 = arith.addi %73, %74 : vector<8x8xi32>
    %76 = tpu.iota {dimensions = array<i32: 1>} : vector<8x8xi32>
    %77 = arith.cmpi sge, %75, %76 : vector<8x8xi32>
    %cst_32 = arith.constant 0.000000e+00 : f32
    %78 = vector.broadcast %cst_32 : f32 to vector<8x32xf32>
    %79 = vector.extract_strided_slice %65 {offsets = [0, 0], sizes = [8, 8], strides = [1, 1]} : vector<8x32xf32> to vector<8x8xf32>
    %80 = arith.truncf %79 : vector<8x8xf32> to vector<8x8xbf16>
    %81 = vector.extract_strided_slice %72 {offsets = [0, 0], sizes = [8, 8], strides = [1, 1]} : vector<8x64xf32> to vector<8x8xf32>
    %82 = arith.truncf %81 : vector<8x8xf32> to vector<8x8xbf16>
    %83 = vector.extract_strided_slice %72 {offsets = [0, 32], sizes = [8, 8], strides = [1, 1]} : vector<8x64xf32> to vector<8x8xf32>
    %84 = arith.truncf %83 : vector<8x8xf32> to vector<8x8xbf16>
    "tpu.trace_start"() <{level = 10 : i32, message = "qd,kd->qk"}> : () -> ()
    %cst_33 = arith.constant dense<0.000000e+00> : vector<8x8xf32>
    %85 = tpu.matmul %80, %82, %cst_33 {dimension_numbers = #tpu.dot_dimension_numbers<[1], [1], [0], [0], [0, 0, 1, 0], [], []>} : vector<8x8xbf16>, vector<8x8xbf16>, vector<8x8xf32> -> vector<8x8xf32>
    %cst_34 = arith.constant -1.000000e+30 : f32
    "tpu.trace_stop"() : () -> ()
    %86 = vector.broadcast %cst_34 : f32 to vector<8x8xf32>
    %87 = arith.select %77, %85, %86 : vector<8x8xi1>, vector<8x8xf32>
    %cst_35 = arith.constant dense<0xFF800000> : vector<8xf32>
    %88 = vector.multi_reduction <maximumf>, %87, %cst_35 [1] : vector<8x8xf32> to vector<8xf32>
    %89 = vector.shape_cast %88 : vector<8xf32> to vector<8x1xf32>
    %90 = vector.broadcast %89 : vector<8x1xf32> to vector<8x8xf32>
    %91 = arith.subf %87, %90 : vector<8x8xf32>
    %92 = math.exp %91 : vector<8x8xf32>
    %cst_36 = arith.constant dense<0.000000e+00> : vector<8xf32>
    %93 = vector.multi_reduction <add>, %92, %cst_36 [1] : vector<8x8xf32> to vector<8xf32>
    %94 = vector.shape_cast %93 : vector<8xf32> to vector<8x1xf32>
    %95 = tpu.reciprocal %94 {approx = true} : vector<8x1xf32> -> vector<8x1xf32>
    %96 = vector.broadcast %95 : vector<8x1xf32> to vector<8x8xf32>
    %97 = arith.mulf %92, %96 : vector<8x8xf32>
    %98 = arith.truncf %97 : vector<8x8xf32> to vector<8x8xbf16>
    %cst_37 = arith.constant dense<0.000000e+00> : vector<8x8xf32>
    %99 = tpu.matmul %98, %84, %cst_37 {dimension_numbers = #tpu.dot_dimension_numbers<[1], [0], [0], [1], [0, 0, 1, 1], [], []>} : vector<8x8xbf16>, vector<8x8xbf16>, vector<8x8xf32> -> vector<8x8xf32>
    %100 = arith.truncf %99 : vector<8x8xf32> to vector<8x8xbf16>
    %c0_38 = arith.constant 0 : index
    %c0_39 = arith.constant 0 : index
    %101 = vector.load %arg10[%c0_38, %c0_39] : memref<32x32xbf16, #tpu.memory_space<vmem>>, vector<8x32xbf16>
    %cst_40 = arith.constant dense<0.000000e+00> : vector<8x32xf32>
    %102 = tpu.matmul %100, %101, %cst_40 {dimension_numbers = #tpu.dot_dimension_numbers<[1], [0], [0], [1], [0, 0, 1, 1], [], []>} : vector<8x8xbf16>, vector<8x32xbf16>, vector<8x32xf32> -> vector<8x32xf32>
    %103 = arith.addf %78, %102 : vector<8x32xf32>
    %104 = vector.extract_strided_slice %65 {offsets = [0, 8], sizes = [8, 8], strides = [1, 1]} : vector<8x32xf32> to vector<8x8xf32>
    %105 = arith.truncf %104 : vector<8x8xf32> to vector<8x8xbf16>
    %106 = vector.extract_strided_slice %72 {offsets = [0, 8], sizes = [8, 8], strides = [1, 1]} : vector<8x64xf32> to vector<8x8xf32>
    %107 = arith.truncf %106 : vector<8x8xf32> to vector<8x8xbf16>
    %108 = vector.extract_strided_slice %72 {offsets = [0, 40], sizes = [8, 8], strides = [1, 1]} : vector<8x64xf32> to vector<8x8xf32>
    %109 = arith.truncf %108 : vector<8x8xf32> to vector<8x8xbf16>
    "tpu.trace_start"() <{level = 10 : i32, message = "qd,kd->qk"}> : () -> ()
    %cst_41 = arith.constant dense<0.000000e+00> : vector<8x8xf32>
    %110 = tpu.matmul %105, %107, %cst_41 {dimension_numbers = #tpu.dot_dimension_numbers<[1], [1], [0], [0], [0, 0, 1, 0], [], []>} : vector<8x8xbf16>, vector<8x8xbf16>, vector<8x8xf32> -> vector<8x8xf32>
    %cst_42 = arith.constant -1.000000e+30 : f32
    "tpu.trace_stop"() : () -> ()
    %111 = vector.broadcast %cst_42 : f32 to vector<8x8xf32>
    %112 = arith.select %77, %110, %111 : vector<8x8xi1>, vector<8x8xf32>
    %cst_43 = arith.constant dense<0xFF800000> : vector<8xf32>
    %113 = vector.multi_reduction <maximumf>, %112, %cst_43 [1] : vector<8x8xf32> to vector<8xf32>
    %114 = vector.shape_cast %113 : vector<8xf32> to vector<8x1xf32>
    %115 = vector.broadcast %114 : vector<8x1xf32> to vector<8x8xf32>
    %116 = arith.subf %112, %115 : vector<8x8xf32>
    %117 = math.exp %116 : vector<8x8xf32>
    %cst_44 = arith.constant dense<0.000000e+00> : vector<8xf32>
    %118 = vector.multi_reduction <add>, %117, %cst_44 [1] : vector<8x8xf32> to vector<8xf32>
    %119 = vector.shape_cast %118 : vector<8xf32> to vector<8x1xf32>
    %120 = tpu.reciprocal %119 {approx = true} : vector<8x1xf32> -> vector<8x1xf32>
    %121 = vector.broadcast %120 : vector<8x1xf32> to vector<8x8xf32>
    %122 = arith.mulf %117, %121 : vector<8x8xf32>
    %123 = arith.truncf %122 : vector<8x8xf32> to vector<8x8xbf16>
    %cst_45 = arith.constant dense<0.000000e+00> : vector<8x8xf32>
    %124 = tpu.matmul %123, %109, %cst_45 {dimension_numbers = #tpu.dot_dimension_numbers<[1], [0], [0], [1], [0, 0, 1, 1], [], []>} : vector<8x8xbf16>, vector<8x8xbf16>, vector<8x8xf32> -> vector<8x8xf32>
    %125 = arith.truncf %124 : vector<8x8xf32> to vector<8x8xbf16>
    %c8 = arith.constant 8 : index
    %c0_46 = arith.constant 0 : index
    %126 = vector.load %arg10[%c8, %c0_46] : memref<32x32xbf16, #tpu.memory_space<vmem>>, vector<8x32xbf16>
    %cst_47 = arith.constant dense<0.000000e+00> : vector<8x32xf32>
    %127 = tpu.matmul %125, %126, %cst_47 {dimension_numbers = #tpu.dot_dimension_numbers<[1], [0], [0], [1], [0, 0, 1, 1], [], []>} : vector<8x8xbf16>, vector<8x32xbf16>, vector<8x32xf32> -> vector<8x32xf32>
    %128 = arith.addf %103, %127 : vector<8x32xf32>
    %129 = vector.extract_strided_slice %65 {offsets = [0, 16], sizes = [8, 8], strides = [1, 1]} : vector<8x32xf32> to vector<8x8xf32>
    %130 = arith.truncf %129 : vector<8x8xf32> to vector<8x8xbf16>
    %131 = vector.extract_strided_slice %72 {offsets = [0, 16], sizes = [8, 8], strides = [1, 1]} : vector<8x64xf32> to vector<8x8xf32>
    %132 = arith.truncf %131 : vector<8x8xf32> to vector<8x8xbf16>
    %133 = vector.extract_strided_slice %72 {offsets = [0, 48], sizes = [8, 8], strides = [1, 1]} : vector<8x64xf32> to vector<8x8xf32>
    %134 = arith.truncf %133 : vector<8x8xf32> to vector<8x8xbf16>
    "tpu.trace_start"() <{level = 10 : i32, message = "qd,kd->qk"}> : () -> ()
    %cst_48 = arith.constant dense<0.000000e+00> : vector<8x8xf32>
    %135 = tpu.matmul %130, %132, %cst_48 {dimension_numbers = #tpu.dot_dimension_numbers<[1], [1], [0], [0], [0, 0, 1, 0], [], []>} : vector<8x8xbf16>, vector<8x8xbf16>, vector<8x8xf32> -> vector<8x8xf32>
    %cst_49 = arith.constant -1.000000e+30 : f32
    "tpu.trace_stop"() : () -> ()
    %136 = vector.broadcast %cst_49 : f32 to vector<8x8xf32>
    %137 = arith.select %77, %135, %136 : vector<8x8xi1>, vector<8x8xf32>
    %cst_50 = arith.constant dense<0xFF800000> : vector<8xf32>
    %138 = vector.multi_reduction <maximumf>, %137, %cst_50 [1] : vector<8x8xf32> to vector<8xf32>
    %139 = vector.shape_cast %138 : vector<8xf32> to vector<8x1xf32>
    %140 = vector.broadcast %139 : vector<8x1xf32> to vector<8x8xf32>
    %141 = arith.subf %137, %140 : vector<8x8xf32>
    %142 = math.exp %141 : vector<8x8xf32>
    %cst_51 = arith.constant dense<0.000000e+00> : vector<8xf32>
    %143 = vector.multi_reduction <add>, %142, %cst_51 [1] : vector<8x8xf32> to vector<8xf32>
    %144 = vector.shape_cast %143 : vector<8xf32> to vector<8x1xf32>
    %145 = tpu.reciprocal %144 {approx = true} : vector<8x1xf32> -> vector<8x1xf32>
    %146 = vector.broadcast %145 : vector<8x1xf32> to vector<8x8xf32>
    %147 = arith.mulf %142, %146 : vector<8x8xf32>
    %148 = arith.truncf %147 : vector<8x8xf32> to vector<8x8xbf16>
    %cst_52 = arith.constant dense<0.000000e+00> : vector<8x8xf32>
    %149 = tpu.matmul %148, %134, %cst_52 {dimension_numbers = #tpu.dot_dimension_numbers<[1], [0], [0], [1], [0, 0, 1, 1], [], []>} : vector<8x8xbf16>, vector<8x8xbf16>, vector<8x8xf32> -> vector<8x8xf32>
    %150 = arith.truncf %149 : vector<8x8xf32> to vector<8x8xbf16>
    %c16 = arith.constant 16 : index
    %c0_53 = arith.constant 0 : index
    %151 = vector.load %arg10[%c16, %c0_53] : memref<32x32xbf16, #tpu.memory_space<vmem>>, vector<8x32xbf16>
    %cst_54 = arith.constant dense<0.000000e+00> : vector<8x32xf32>
    %152 = tpu.matmul %150, %151, %cst_54 {dimension_numbers = #tpu.dot_dimension_numbers<[1], [0], [0], [1], [0, 0, 1, 1], [], []>} : vector<8x8xbf16>, vector<8x32xbf16>, vector<8x32xf32> -> vector<8x32xf32>
    %153 = arith.addf %128, %152 : vector<8x32xf32>
    %154 = vector.extract_strided_slice %65 {offsets = [0, 24], sizes = [8, 8], strides = [1, 1]} : vector<8x32xf32> to vector<8x8xf32>
    %155 = arith.truncf %154 : vector<8x8xf32> to vector<8x8xbf16>
    %156 = vector.extract_strided_slice %72 {offsets = [0, 24], sizes = [8, 8], strides = [1, 1]} : vector<8x64xf32> to vector<8x8xf32>
    %157 = arith.truncf %156 : vector<8x8xf32> to vector<8x8xbf16>
    %158 = vector.extract_strided_slice %72 {offsets = [0, 56], sizes = [8, 8], strides = [1, 1]} : vector<8x64xf32> to vector<8x8xf32>
    %159 = arith.truncf %158 : vector<8x8xf32> to vector<8x8xbf16>
    "tpu.trace_start"() <{level = 10 : i32, message = "qd,kd->qk"}> : () -> ()
    %cst_55 = arith.constant dense<0.000000e+00> : vector<8x8xf32>
    %160 = tpu.matmul %155, %157, %cst_55 {dimension_numbers = #tpu.dot_dimension_numbers<[1], [1], [0], [0], [0, 0, 1, 0], [], []>} : vector<8x8xbf16>, vector<8x8xbf16>, vector<8x8xf32> -> vector<8x8xf32>
    %cst_56 = arith.constant -1.000000e+30 : f32
    "tpu.trace_stop"() : () -> ()
    %161 = vector.broadcast %cst_56 : f32 to vector<8x8xf32>
    %162 = arith.select %77, %160, %161 : vector<8x8xi1>, vector<8x8xf32>
    %cst_57 = arith.constant dense<0xFF800000> : vector<8xf32>
    %163 = vector.multi_reduction <maximumf>, %162, %cst_57 [1] : vector<8x8xf32> to vector<8xf32>
    %164 = vector.shape_cast %163 : vector<8xf32> to vector<8x1xf32>
    %165 = vector.broadcast %164 : vector<8x1xf32> to vector<8x8xf32>
    %166 = arith.subf %162, %165 : vector<8x8xf32>
    %167 = math.exp %166 : vector<8x8xf32>
    %cst_58 = arith.constant dense<0.000000e+00> : vector<8xf32>
    %168 = vector.multi_reduction <add>, %167, %cst_58 [1] : vector<8x8xf32> to vector<8xf32>
    %169 = vector.shape_cast %168 : vector<8xf32> to vector<8x1xf32>
    %170 = tpu.reciprocal %169 {approx = true} : vector<8x1xf32> -> vector<8x1xf32>
    %171 = vector.broadcast %170 : vector<8x1xf32> to vector<8x8xf32>
    %172 = arith.mulf %167, %171 : vector<8x8xf32>
    %173 = arith.truncf %172 : vector<8x8xf32> to vector<8x8xbf16>
    %cst_59 = arith.constant dense<0.000000e+00> : vector<8x8xf32>
    %174 = tpu.matmul %173, %159, %cst_59 {dimension_numbers = #tpu.dot_dimension_numbers<[1], [0], [0], [1], [0, 0, 1, 1], [], []>} : vector<8x8xbf16>, vector<8x8xbf16>, vector<8x8xf32> -> vector<8x8xf32>
    %175 = arith.truncf %174 : vector<8x8xf32> to vector<8x8xbf16>
    %c24 = arith.constant 24 : index
    %c0_60 = arith.constant 0 : index
    %176 = vector.load %arg10[%c24, %c0_60] : memref<32x32xbf16, #tpu.memory_space<vmem>>, vector<8x32xbf16>
    %cst_61 = arith.constant dense<0.000000e+00> : vector<8x32xf32>
    %177 = tpu.matmul %175, %176, %cst_61 {dimension_numbers = #tpu.dot_dimension_numbers<[1], [0], [0], [1], [0, 0, 1, 1], [], []>} : vector<8x8xbf16>, vector<8x32xbf16>, vector<8x32xf32> -> vector<8x32xf32>
    %178 = arith.addf %153, %177 : vector<8x32xf32>
    %c0_62 = arith.constant 0 : index
    %c0_63 = arith.constant 0 : index
    %179 = vector.load %arg11[%c0_62, %c0_63] : memref<1x32xf32, #tpu.memory_space<vmem>>, vector<1x32xf32>
    %180 = vector.shape_cast %179 : vector<1x32xf32> to vector<32xf32>
    %181 = vector.shape_cast %180 : vector<32xf32> to vector<1x32xf32>
    %182 = vector.broadcast %181 : vector<1x32xf32> to vector<8x32xf32>
    %183 = arith.addf %178, %182 : vector<8x32xf32>
    %184 = arith.truncf %3 : vector<8x32xf32> to vector<8x32xbf16>
    %c0_64 = arith.constant 0 : index
    %c0_65 = arith.constant 0 : index
    %185 = vector.load %arg12[%c0_64, %c0_65] : memref<32x32xbf16, #tpu.memory_space<vmem>>, vector<32x32xbf16>
    %cst_66 = arith.constant dense<0.000000e+00> : vector<8x32xf32>
    %186 = tpu.matmul %184, %185, %cst_66 {dimension_numbers = #tpu.dot_dimension_numbers<[1], [0], [0], [1], [0, 0, 1, 1], [], []>} : vector<8x32xbf16>, vector<32x32xbf16>, vector<8x32xf32> -> vector<8x32xf32>
    %c0_67 = arith.constant 0 : index
    %c0_68 = arith.constant 0 : index
    %187 = vector.load %arg13[%c0_67, %c0_68] : memref<1x32xf32, #tpu.memory_space<vmem>>, vector<1x32xf32>
    %188 = vector.shape_cast %187 : vector<1x32xf32> to vector<32xf32>
    %189 = vector.shape_cast %188 : vector<32xf32> to vector<1x32xf32>
    %190 = vector.broadcast %189 : vector<1x32xf32> to vector<8x32xf32>
    %191 = arith.addf %186, %190 : vector<8x32xf32>
    %192 = arith.negf %191 : vector<8x32xf32>
    %193 = math.exp %192 : vector<8x32xf32>
    %cst_69 = arith.constant 1.000000e+00 : f32
    %194 = vector.broadcast %cst_69 : f32 to vector<8x32xf32>
    %195 = arith.addf %194, %193 : vector<8x32xf32>
    %196 = arith.divf %194, %195 : vector<8x32xf32>
    %197 = arith.subf %183, %3 : vector<8x32xf32>
    %198 = arith.mulf %196, %197 : vector<8x32xf32>
    %199 = arith.addf %3, %198 : vector<8x32xf32>
    %c0_70 = arith.constant 0 : index
    %c0_71 = arith.constant 0 : index
    %200 = vector.load %arg14[%c0_70, %c0_71] : memref<1x32xf32, #tpu.memory_space<vmem>>, vector<1x32xf32>
    %201 = vector.shape_cast %200 : vector<1x32xf32> to vector<32xf32>
    %c0_72 = arith.constant 0 : index
    %c0_73 = arith.constant 0 : index
    %202 = vector.load %arg15[%c0_72, %c0_73] : memref<1x32xf32, #tpu.memory_space<vmem>>, vector<1x32xf32>
    %203 = vector.shape_cast %202 : vector<1x32xf32> to vector<32xf32>
    %cst_74 = arith.constant dense<0.000000e+00> : vector<8xf32>
    %204 = vector.multi_reduction <add>, %199, %cst_74 [1] : vector<8x32xf32> to vector<8xf32>
    %205 = vector.shape_cast %204 : vector<8xf32> to vector<8x1xf32>
    %cst_75 = arith.constant 3.200000e+01 : f32
    %206 = vector.broadcast %cst_75 : f32 to vector<8x1xf32>
    %207 = arith.divf %205, %206 : vector<8x1xf32>
    %208 = vector.broadcast %207 : vector<8x1xf32> to vector<8x32xf32>
    %209 = arith.subf %199, %208 : vector<8x32xf32>
    %210 = arith.mulf %209, %209 : vector<8x32xf32>
    %cst_76 = arith.constant dense<0.000000e+00> : vector<8xf32>
    %211 = vector.multi_reduction <add>, %210, %cst_76 [1] : vector<8x32xf32> to vector<8xf32>
    %212 = vector.shape_cast %211 : vector<8xf32> to vector<8x1xf32>
    %cst_77 = arith.constant 3.200000e+01 : f32
    %213 = vector.broadcast %cst_77 : f32 to vector<8x1xf32>
    %214 = arith.divf %212, %213 : vector<8x1xf32>
    %cst_78 = arith.constant 9.99999974E-6 : f32
    %215 = vector.broadcast %cst_78 : f32 to vector<8x1xf32>
    %216 = arith.addf %214, %215 : vector<8x1xf32>
    %217 = math.rsqrt %216 : vector<8x1xf32>
    %218 = vector.broadcast %217 : vector<8x1xf32> to vector<8x32xf32>
    %219 = arith.mulf %209, %218 : vector<8x32xf32>
    %220 = vector.shape_cast %201 : vector<32xf32> to vector<1x32xf32>
    %221 = vector.broadcast %220 : vector<1x32xf32> to vector<8x32xf32>
    %222 = arith.mulf %219, %221 : vector<8x32xf32>
    %223 = vector.shape_cast %203 : vector<32xf32> to vector<1x32xf32>
    %224 = vector.broadcast %223 : vector<1x32xf32> to vector<8x32xf32>
    %225 = arith.addf %222, %224 : vector<8x32xf32>
    %226 = arith.truncf %225 : vector<8x32xf32> to vector<8x32xbf16>
    %c0_79 = arith.constant 0 : index
    %c0_80 = arith.constant 0 : index
    %227 = vector.load %arg16[%c0_79, %c0_80] : memref<32x256xbf16, #tpu.memory_space<vmem>>, vector<32x256xbf16>
    %cst_81 = arith.constant dense<0.000000e+00> : vector<8x256xf32>
    %228 = tpu.matmul %226, %227, %cst_81 {dimension_numbers = #tpu.dot_dimension_numbers<[1], [0], [0], [1], [0, 0, 1, 1], [], []>} : vector<8x32xbf16>, vector<32x256xbf16>, vector<8x256xf32> -> vector<8x256xf32>
    %c0_82 = arith.constant 0 : index
    %c0_83 = arith.constant 0 : index
    %229 = vector.load %arg17[%c0_82, %c0_83] : memref<1x256xf32, #tpu.memory_space<vmem>>, vector<1x256xf32>
    %230 = vector.shape_cast %229 : vector<1x256xf32> to vector<256xf32>
    %231 = vector.shape_cast %230 : vector<256xf32> to vector<1x256xf32>
    %232 = vector.broadcast %231 : vector<1x256xf32> to vector<8x256xf32>
    %233 = arith.addf %228, %232 : vector<8x256xf32>
    %234 = vector.extract_strided_slice %233 {offsets = [0, 0], sizes = [8, 128], strides = [1, 1]} : vector<8x256xf32> to vector<8x128xf32>
    %235 = vector.extract_strided_slice %233 {offsets = [0, 128], sizes = [8, 128], strides = [1, 1]} : vector<8x256xf32> to vector<8x128xf32>
    %236 = arith.negf %234 : vector<8x128xf32>
    %237 = math.exp %236 : vector<8x128xf32>
    %cst_84 = arith.constant 1.000000e+00 : f32
    %238 = vector.broadcast %cst_84 : f32 to vector<8x128xf32>
    %239 = arith.addf %238, %237 : vector<8x128xf32>
    %240 = arith.divf %238, %239 : vector<8x128xf32>
    %241 = arith.mulf %234, %240 : vector<8x128xf32>
    %242 = arith.mulf %241, %235 : vector<8x128xf32>
    %243 = arith.truncf %242 : vector<8x128xf32> to vector<8x128xbf16>
    %c0_85 = arith.constant 0 : index
    %c0_86 = arith.constant 0 : index
    %244 = vector.load %arg18[%c0_85, %c0_86] : memref<128x32xbf16, #tpu.memory_space<vmem>>, vector<128x32xbf16>
    %cst_87 = arith.constant dense<0.000000e+00> : vector<8x32xf32>
    %245 = tpu.matmul %243, %244, %cst_87 {dimension_numbers = #tpu.dot_dimension_numbers<[1], [0], [0], [1], [0, 0, 1, 1], [], []>} : vector<8x128xbf16>, vector<128x32xbf16>, vector<8x32xf32> -> vector<8x32xf32>
    %c0_88 = arith.constant 0 : index
    %c0_89 = arith.constant 0 : index
    %246 = vector.load %arg19[%c0_88, %c0_89] : memref<1x32xf32, #tpu.memory_space<vmem>>, vector<1x32xf32>
    %247 = vector.shape_cast %246 : vector<1x32xf32> to vector<32xf32>
    %248 = vector.shape_cast %247 : vector<32xf32> to vector<1x32xf32>
    %249 = vector.broadcast %248 : vector<1x32xf32> to vector<8x32xf32>
    %250 = arith.addf %245, %249 : vector<8x32xf32>
    %251 = arith.addf %199, %250 : vector<8x32xf32>
    %c0_90 = arith.constant 0 : index
    %c0_91 = arith.constant 0 : index
    %c0_92 = arith.constant 0 : index
    %252 = vector.load %arg20[%c0_90, %c0_91, %c0_92] : memref<1x8x32xf32, #tpu.memory_space<vmem>>, vector<1x8x32xf32>
    %253 = vector.shape_cast %252 : vector<1x8x32xf32> to vector<8x32xf32>
    %254 = vector.shape_cast %251 : vector<8x32xf32> to vector<1x8x32xf32>
    tpu.vector_store %arg20[%c0_90, %c0_91, %c0_92], %254 {strides = array<i32>} : memref<1x8x32xf32, #tpu.memory_space<vmem>>, vector<1x8x32xf32>,
    return
  }
  func.func @transform_0(%arg0: i32, %arg1: i32) -> (i32, i32, i32) {
    %c0_i32 = arith.constant 0 : i32
    %c0_i32_0 = arith.constant 0 : i32
    %c0_i32_1 = arith.constant 0 : i32
    return %arg0, %c0_i32, %c0_i32_0 : i32, i32, i32
  }
  func.func @transform_1(%arg0: i32, %arg1: i32) -> (i32, i32, i32) {
    %c0_i32 = arith.constant 0 : i32
    %c0_i32_0 = arith.constant 0 : i32
    return %arg0, %arg1, %c0_i32 : i32, i32, i32
  }
  func.func @transform_2(%arg0: i32, %arg1: i32) -> (i32, i32) {
    %c0_i32 = arith.constant 0 : i32
    %c0_i32_0 = arith.constant 0 : i32
    %c0_i32_1 = arith.constant 0 : i32
    return %c0_i32, %c0_i32_0 : i32, i32
  }
  func.func @transform_3(%arg0: i32, %arg1: i32) -> (i32, i32) {
    %c0_i32 = arith.constant 0 : i32
    %c0_i32_0 = arith.constant 0 : i32
    %c0_i32_1 = arith.constant 0 : i32
    return %c0_i32, %c0_i32_0 : i32, i32
  }
  func.func @transform_4(%arg0: i32, %arg1: i32) -> (i32, i32) {
    %c0_i32 = arith.constant 0 : i32
    %c0_i32_0 = arith.constant 0 : i32
    %c0_i32_1 = arith.constant 0 : i32
    return %c0_i32, %c0_i32_0 : i32, i32
  }
  func.func @transform_5(%arg0: i32, %arg1: i32) -> (i32, i32) {
    %c0_i32 = arith.constant 0 : i32
    %c0_i32_0 = arith.constant 0 : i32
    %c0_i32_1 = arith.constant 0 : i32
    return %c0_i32, %c0_i32_0 : i32, i32
  }
  func.func @transform_6(%arg0: i32, %arg1: i32) -> (i32, i32) {
    %c0_i32 = arith.constant 0 : i32
    %c0_i32_0 = arith.constant 0 : i32
    %c0_i32_1 = arith.constant 0 : i32
    return %c0_i32, %c0_i32_0 : i32, i32
  }
  func.func @transform_7(%arg0: i32, %arg1: i32) -> (i32, i32) {
    %c0_i32 = arith.constant 0 : i32
    %c0_i32_0 = arith.constant 0 : i32
    %c0_i32_1 = arith.constant 0 : i32
    return %c0_i32, %c0_i32_0 : i32, i32
  }
  func.func @transform_8(%arg0: i32, %arg1: i32) -> (i32, i32) {
    %c0_i32 = arith.constant 0 : i32
    %c0_i32_0 = arith.constant 0 : i32
    %c0_i32_1 = arith.constant 0 : i32
    return %c0_i32, %c0_i32_0 : i32, i32
  }
  func.func @transform_9(%arg0: i32, %arg1: i32) -> (i32, i32) {
    %c0_i32 = arith.constant 0 : i32
    %c0_i32_0 = arith.constant 0 : i32
    %c0_i32_1 = arith.constant 0 : i32
    return %c0_i32, %c0_i32_0 : i32, i32
  }
  func.func @transform_10(%arg0: i32, %arg1: i32) -> (i32, i32) {
    %c0_i32 = arith.constant 0 : i32
    %c0_i32_0 = arith.constant 0 : i32
    %c0_i32_1 = arith.constant 0 : i32
    return %c0_i32, %c0_i32_0 : i32, i32
  }
  func.func @transform_11(%arg0: i32, %arg1: i32) -> (i32, i32) {
    %c0_i32 = arith.constant 0 : i32
    %c0_i32_0 = arith.constant 0 : i32
    %c0_i32_1 = arith.constant 0 : i32
    return %c0_i32, %c0_i32_0 : i32, i32
  }
  func.func @transform_12(%arg0: i32, %arg1: i32) -> (i32, i32) {
    %c0_i32 = arith.constant 0 : i32
    %c0_i32_0 = arith.constant 0 : i32
    %c0_i32_1 = arith.constant 0 : i32
    return %c0_i32, %c0_i32_0 : i32, i32
  }
  func.func @transform_13(%arg0: i32, %arg1: i32) -> (i32, i32) {
    %c0_i32 = arith.constant 0 : i32
    %c0_i32_0 = arith.constant 0 : i32
    %c0_i32_1 = arith.constant 0 : i32
    return %c0_i32, %c0_i32_0 : i32, i32
  }
  func.func @transform_14(%arg0: i32, %arg1: i32) -> (i32, i32) {
    %c0_i32 = arith.constant 0 : i32
    %c0_i32_0 = arith.constant 0 : i32
    %c0_i32_1 = arith.constant 0 : i32
    return %c0_i32, %c0_i32_0 : i32, i32
  }
  func.func @transform_15(%arg0: i32, %arg1: i32) -> (i32, i32) {
    %c0_i32 = arith.constant 0 : i32
    %c0_i32_0 = arith.constant 0 : i32
    %c0_i32_1 = arith.constant 0 : i32
    return %c0_i32, %c0_i32_0 : i32, i32
  }
  func.func @transform_16(%arg0: i32, %arg1: i32) -> (i32, i32) {
    %c0_i32 = arith.constant 0 : i32
    %c0_i32_0 = arith.constant 0 : i32
    %c0_i32_1 = arith.constant 0 : i32
    return %c0_i32, %c0_i32_0 : i32, i32
  }
  func.func @transform_17(%arg0: i32, %arg1: i32) -> (i32, i32) {
    %c0_i32 = arith.constant 0 : i32
    %c0_i32_0 = arith.constant 0 : i32
    %c0_i32_1 = arith.constant 0 : i32
    return %c0_i32, %c0_i32_0 : i32, i32
  }
  func.func @transform_18(%arg0: i32, %arg1: i32) -> (i32, i32, i32) {
    %c0_i32 = arith.constant 0 : i32
    %c0_i32_0 = arith.constant 0 : i32
    return %arg0, %arg1, %c0_i32 : i32, i32, i32
  }
}

</mosaic_0001>

<llo_original>
// kernel: tpu_custom_call.1
$region0: #{tpu_custom_call.1}
  #allocation0 [shape = 'u32[]', space=smem, size = 0x4, offset = 0x4, fixed_abs, tag = 'smem constant byte address 0x4 - core index']
  #allocation1 [shape = 'u32[144,128]{1,0:T(1,128)}', space=vmem, size = 0x12000, scoped, tag = 'internal scratch']
  %s0 = inlined_call_operand.vmem [shape: f32[2,8,32], index: 0, kind: input, shape index: {}]
  %s1 = inlined_call_operand.vmem [shape: f32[2,8,32], index: 1, kind: input, shape index: {}]
  %s2 = inlined_call_operand.vmem [shape: f32[1,32], index: 2, kind: input, shape index: {}]
  %s3 = inlined_call_operand.vmem [shape: f32[1,32], index: 3, kind: input, shape index: {}]
  %s4 = inlined_call_operand.vmem [shape: bf16[32,32], index: 4, kind: input, shape index: {}]
  %s5 = inlined_call_operand.vmem [shape: f32[1,32], index: 5, kind: input, shape index: {}]
  %s6 = inlined_call_operand.hbm [shape: bf16[32,64], index: 6, kind: input, shape index: {}]
  %s7 = inlined_call_operand.vmem [shape: f32[1,64], index: 7, kind: input, shape index: {}]
  %s8 = inlined_call_operand.hbm [shape: bf16[32,32], index: 8, kind: input, shape index: {}]
  %s9 = inlined_call_operand.vmem [shape: f32[1,32], index: 9, kind: input, shape index: {}]
  %s10 = inlined_call_operand.hbm [shape: bf16[32,32], index: 10, kind: input, shape index: {}]
  %s11 = inlined_call_operand.vmem [shape: f32[1,32], index: 11, kind: input, shape index: {}]
  %s12 = inlined_call_operand.vmem [shape: f32[1,32], index: 12, kind: input, shape index: {}]
  %s13 = inlined_call_operand.vmem [shape: f32[1,32], index: 13, kind: input, shape index: {}]
  %s14 = inlined_call_operand.vmem [shape: bf16[32,256], index: 14, kind: input, shape index: {}]
  %s15 = inlined_call_operand.vmem [shape: f32[1,256], index: 15, kind: input, shape index: {}]
  %s16 = inlined_call_operand.vmem [shape: bf16[128,32], index: 16, kind: input, shape index: {}]
  %s17 = inlined_call_operand.vmem [shape: f32[1,32], index: 17, kind: input, shape index: {}]
  %s18 = inlined_call_operand.hbm [shape: f32[2,8,32], index: 18, kind: output, shape index: {}]
  %s19 = sld [smem:[#allocation0]]
  $region117: #{tpu_custom_call.1} parent=0
    _
  %s21 = ssub.s32 1, %s19
  %s22 = scalar_select 0, %s21, %s19
  $region1: #{tpu_custom_call.1} parent=0
    #allocation2 [shape = 'u8[8192]{0}', space=vmem, size = 0x2000, scoped, tag = 'input window, operand 6, single buffered']
    #allocation3 [shape = 's32[2]{0}', space=sflag, size = 0x8, scoped, tag = 'scoped memory for tpu_custom_call.1']
    #allocation4 [shape = 's32[2]{0}', space=sflag, size = 0x8, scoped, tag = 'scoped memory for tpu_custom_call.1']
    #allocation5 [shape = 'u8[8192]{0}', space=vmem, size = 0x2000, scoped, tag = 'input window, operand 8, single buffered']
    #allocation6 [shape = 's32[1]{0}', space=sflag, size = 0x4, scoped, tag = 'scoped memory for tpu_custom_call.1']
    #allocation7 [shape = 'u8[8192]{0}', space=vmem, size = 0x2000, scoped, tag = 'input window, operand 10, single buffered']
    #allocation8 [shape = 'u8[8192]{0}', space=vmem, size = 0x2000, scoped, tag = 'output window, operand 0']
    %23 = vsyncpa [#allocation3], 0
    %24 = vsyncpa [#allocation6], 0
    %25 = vsyncpa [#allocation4], 0
    %s26 = scalar_lea.sflag [#allocation4], 1
    %27 = vsyncpa %s26, 0
    loop: start=0, step=1, limit=4
    $region2: #{tpu_custom_call.1} parent=1 // loop_pre_header
      _
    $region3: #{tpu_custom_call.1} parent=1 // loop_header
      %s29 = sphi 0, %s33
      %p30 = scmp.ge.s32.totalorder %s29, 4
      %s36 = sphi 0, %s48
      %s37 = sphi 0, %s44
      %s38 = sphi 0, %s36
      %s39 = sphi 0, %s37
      %s40 = sphi 0, %s38
      %s41 = sphi 0, %s39
      %s51 = sphi 0, %s53
      %s54 = sphi 0, %s51
      %s55 = sphi 0, %s54
      %s71 = sphi 0, %s55
      %s79 = sphi 0, %s81
      %s82 = sphi 0, %s79
      %s83 = sphi 0, %s82
      %s99 = sphi 0, %s83
      %s103 = sphi 0, %s103
      %s105 = sphi 0, %s103
      %s106 = sphi 0, %s105
      %s120 = sphi 0, %s106
      %s124 = sphi 0, %s124
      %s126 = sphi 0, %s124
      %s127 = sphi 0, %s126
      %s141 = sphi 0, %s127
      %s145 = sphi 0, %s145
      %s147 = sphi 0, %s145
      %s148 = sphi 0, %s147
      %s162 = sphi 0, %s148
      %s166 = sphi 0, %s166
      %s168 = sphi 0, %s166
      %s169 = sphi 0, %s168
      %s183 = sphi 0, %s169
      %s187 = sphi 0, %s187
      %s189 = sphi 0, %s187
      %s190 = sphi 0, %s189
      %s204 = sphi 0, %s190
      %s208 = sphi 0, %s208
      %s210 = sphi 0, %s208
      %s211 = sphi 0, %s210
      %s225 = sphi 0, %s211
      %s229 = sphi 0, %s229
      %s231 = sphi 0, %s229
      %s232 = sphi 0, %s231
      %s246 = sphi 0, %s232
      %s250 = sphi 0, %s250
      %s252 = sphi 0, %s250
      %s253 = sphi 0, %s252
      %s267 = sphi 0, %s253
      %s271 = sphi 0, %s271
      %s273 = sphi 0, %s271
      %s274 = sphi 0, %s273
      %s288 = sphi 0, %s274
      %s292 = sphi 0, %s292
      %s294 = sphi 0, %s292
      %s295 = sphi 0, %s294
      %s309 = sphi 0, %s295
      %s313 = sphi 0, %s313
      %s315 = sphi 0, %s313
      %s316 = sphi 0, %s315
      %s330 = sphi 0, %s316
      %s334 = sphi 0, %s334
      %s336 = sphi 0, %s334
      %s337 = sphi 0, %s336
      %s351 = sphi 0, %s337
      %s355 = sphi 0, %s355
      %s357 = sphi 0, %s355
      %s358 = sphi 0, %s357
      %s372 = sphi 0, %s358
      %s376 = sphi 0, %s376
      %s378 = sphi 0, %s376
      %s379 = sphi 0, %s378
      %s393 = sphi 0, %s379
      %s397 = sphi 0, %s397
      %s399 = sphi 0, %s397
      %s400 = sphi 0, %s399
      %s414 = sphi 0, %s400
      %s418 = sphi 0, %s418
      %s420 = sphi 0, %s418
      %s421 = sphi 0, %s420
      %s435 = sphi 0, %s421
      %s443 = sphi 0, %s445
      %s446 = sphi 0, %s443
      %s447 = sphi 0, %s446
      %s463 = sphi 0, %s447
    $region4: #{tpu_custom_call.1} parent=1 // loop_header_branch
      %32 = sbr.rel (%p30) target = $region8
    $region5: #{tpu_custom_call.1} parent=1 // loop_body
      %s34 = ssub.s32 %s29, 1
      %s35 = ssub.s32 %s29, 2
      %s42 = sadd.s32 1, %s37
      %p43 = scmp.ge.s32.totalorder %s42, 1
      %s44 = scalar_select %p43, 0, %s42
      %s45 = sadd.s32 1, %s36
      %s46 = scalar_select %p43, %s45, %s36
      %p47 = scmp.ge.s32.totalorder %s46, 2
      %s48 = scalar_select %p47, 0, %s46
      %s49 = ssub.s32 %s36, %s48
      %p50 = scmp.eq.s32.totalorder %s49, 0
      %s52 = sadd.s32 %s51, 1
      %s53 = scalar_select %p50, %s51, %s52
      %p56 = pneg %p50
      %p57 = scmp.eq.s32.totalorder %s29, 1
      %p58 = por %p56, %p57
      %p59 = scmp.ne.s32.totalorder %s51, %s54
      %p60 = scmp.eq.s32.totalorder %s29, 0
      %p61 = por %p59, %p60
      %p62 = scmp.ne.s32.totalorder %s51, %s54
      %p63 = scmp.eq.s32.totalorder %s34, 1
      %p64 = por %p62, %p63
      %p65 = scmp.ne.s32.totalorder %s54, %s55
      %p66 = scmp.eq.s32.totalorder %s34, 0
      %p67 = por %p65, %p66
      %p68 = scmp.ne.s32.totalorder %s54, %s55
      %p69 = scmp.eq.s32.totalorder %s35, 1
      %p70 = por %p68, %p69
      %p72 = scmp.ne.s32.totalorder %s55, %s71
      %p73 = scmp.eq.s32.totalorder %s35, 0
      %p74 = por %p72, %p73
      %s75 = ssub.s32 %s36, %s48
      %s76 = ssub.s32 %s37, %s44
      %s77 = sor.u32 %s75, %s76
      %p78 = scmp.eq.s32.totalorder %s77, 0
      %s80 = sadd.s32 %s79, 1
      %s81 = scalar_select %p78, %s79, %s80
      %p84 = pneg %p78
      %p85 = scmp.eq.s32.totalorder %s29, 1
      %p86 = por %p84, %p85
      %p87 = scmp.ne.s32.totalorder %s79, %s82
      %p88 = scmp.eq.s32.totalorder %s29, 0
      %p89 = por %p87, %p88
      %p90 = scmp.ne.s32.totalorder %s79, %s82
      %p91 = scmp.eq.s32.totalorder %s34, 1
      %p92 = por %p90, %p91
      %p93 = scmp.ne.s32.totalorder %s82, %s83
      %p94 = scmp.eq.s32.totalorder %s34, 0
      %p95 = por %p93, %p94
      %p96 = scmp.ne.s32.totalorder %s82, %s83
      %p97 = scmp.eq.s32.totalorder %s35, 1
      %p98 = por %p96, %p97
      %p100 = scmp.ne.s32.totalorder %s83, %s99
      %p101 = scmp.eq.s32.totalorder %s35, 0
      %p102 = por %p100, %p101
      %s104 = sadd.s32 %s103, 1
      %p107 = scmp.eq.s32.totalorder %s29, 1
      %p108 = scmp.ne.s32.totalorder %s103, %s105
      %p109 = scmp.eq.s32.totalorder %s29, 0
      %p110 = por %p108, %p109
      %p111 = scmp.ne.s32.totalorder %s103, %s105
      %p112 = scmp.eq.s32.totalorder %s34, 1
      %p113 = por %p111, %p112
      %p114 = scmp.ne.s32.totalorder %s105, %s106
      %p115 = scmp.eq.s32.totalorder %s34, 0
      %p116 = por %p114, %p115
      %p117 = scmp.ne.s32.totalorder %s105, %s106
      %p118 = scmp.eq.s32.totalorder %s35, 1
      %p119 = por %p117, %p118
      %p121 = scmp.ne.s32.totalorder %s106, %s120
      %p122 = scmp.eq.s32.totalorder %s35, 0
      %p123 = por %p121, %p122
      %s125 = sadd.s32 %s124, 1
      %p128 = scmp.eq.s32.totalorder %s29, 1
      %p129 = scmp.ne.s32.totalorder %s124, %s126
      %p130 = scmp.eq.s32.totalorder %s29, 0
      %p131 = por %p129, %p130
      %p132 = scmp.ne.s32.totalorder %s124, %s126
      %p133 = scmp.eq.s32.totalorder %s34, 1
      %p134 = por %p132, %p133
      %p135 = scmp.ne.s32.totalorder %s126, %s127
      %p136 = scmp.eq.s32.totalorder %s34, 0
      %p137 = por %p135, %p136
      %p138 = scmp.ne.s32.totalorder %s126, %s127
      %p139 = scmp.eq.s32.totalorder %s35, 1
      %p140 = por %p138, %p139
      %p142 = scmp.ne.s32.totalorder %s127, %s141
      %p143 = scmp.eq.s32.totalorder %s35, 0
      %p144 = por %p142, %p143
      %s146 = sadd.s32 %s145, 1
      %p149 = scmp.eq.s32.totalorder %s29, 1
      %p150 = scmp.ne.s32.totalorder %s145, %s147
      %p151 = scmp.eq.s32.totalorder %s29, 0
      %p152 = por %p150, %p151
      %p153 = scmp.ne.s32.totalorder %s145, %s147
      %p154 = scmp.eq.s32.totalorder %s34, 1
      %p155 = por %p153, %p154
      %p156 = scmp.ne.s32.totalorder %s147, %s148
      %p157 = scmp.eq.s32.totalorder %s34, 0
      %p158 = por %p156, %p157
      %p159 = scmp.ne.s32.totalorder %s147, %s148
      %p160 = scmp.eq.s32.totalorder %s35, 1
      %p161 = por %p159, %p160
      %p163 = scmp.ne.s32.totalorder %s148, %s162
      %p164 = scmp.eq.s32.totalorder %s35, 0
      %p165 = por %p163, %p164
      %s167 = sadd.s32 %s166, 1
      %p170 = scmp.eq.s32.totalorder %s29, 1
      %p171 = scmp.ne.s32.totalorder %s166, %s168
      %p172 = scmp.eq.s32.totalorder %s29, 0
      %p173 = por %p171, %p172
      %p174 = scmp.ne.s32.totalorder %s166, %s168
      %p175 = scmp.eq.s32.totalorder %s34, 1
      %p176 = por %p174, %p175
      %p177 = scmp.ne.s32.totalorder %s168, %s169
      %p178 = scmp.eq.s32.totalorder %s34, 0
      %p179 = por %p177, %p178
      %p180 = scmp.ne.s32.totalorder %s168, %s169
      %p181 = scmp.eq.s32.totalorder %s35, 1
      %p182 = por %p180, %p181
      %p184 = scmp.ne.s32.totalorder %s169, %s183
      %p185 = scmp.eq.s32.totalorder %s35, 0
      %p186 = por %p184, %p185
      %s188 = sadd.s32 %s187, 1
      %p191 = scmp.eq.s32.totalorder %s29, 1
      %p192 = scmp.ne.s32.totalorder %s187, %s189
      %p193 = scmp.eq.s32.totalorder %s29, 0
      %p194 = por %p192, %p193
      %p195 = scmp.ne.s32.totalorder %s187, %s189
      %p196 = scmp.eq.s32.totalorder %s34, 1
      %p197 = por %p195, %p196
      %p198 = scmp.ne.s32.totalorder %s189, %s190
      %p199 = scmp.eq.s32.totalorder %s34, 0
      %p200 = por %p198, %p199
      %p201 = scmp.ne.s32.totalorder %s189, %s190
      %p202 = scmp.eq.s32.totalorder %s35, 1
      %p203 = por %p201, %p202
      %p205 = scmp.ne.s32.totalorder %s190, %s204
      %p206 = scmp.eq.s32.totalorder %s35, 0
      %p207 = por %p205, %p206
      %s209 = sadd.s32 %s208, 1
      %p212 = scmp.eq.s32.totalorder %s29, 1
      %p213 = scmp.ne.s32.totalorder %s208, %s210
      %p214 = scmp.eq.s32.totalorder %s29, 0
      %p215 = por %p213, %p214
      %p216 = scmp.ne.s32.totalorder %s208, %s210
      %p217 = scmp.eq.s32.totalorder %s34, 1
      %p218 = por %p216, %p217
      %p219 = scmp.ne.s32.totalorder %s210, %s211
      %p220 = scmp.eq.s32.totalorder %s34, 0
      %p221 = por %p219, %p220
      %p222 = scmp.ne.s32.totalorder %s210, %s211
      %p223 = scmp.eq.s32.totalorder %s35, 1
      %p224 = por %p222, %p223
      %p226 = scmp.ne.s32.totalorder %s211, %s225
      %p227 = scmp.eq.s32.totalorder %s35, 0
      %p228 = por %p226, %p227
      %s230 = sadd.s32 %s229, 1
      %p233 = scmp.eq.s32.totalorder %s29, 1
      %p234 = scmp.ne.s32.totalorder %s229, %s231
      %p235 = scmp.eq.s32.totalorder %s29, 0
      %p236 = por %p234, %p235
      %p237 = scmp.ne.s32.totalorder %s229, %s231
      %p238 = scmp.eq.s32.totalorder %s34, 1
      %p239 = por %p237, %p238
      %p240 = scmp.ne.s32.totalorder %s231, %s232
      %p241 = scmp.eq.s32.totalorder %s34, 0
      %p242 = por %p240, %p241
      %p243 = scmp.ne.s32.totalorder %s231, %s232
      %p244 = scmp.eq.s32.totalorder %s35, 1
      %p245 = por %p243, %p244
      %p247 = scmp.ne.s32.totalorder %s232, %s246
      %p248 = scmp.eq.s32.totalorder %s35, 0
      %p249 = por %p247, %p248
      %s251 = sadd.s32 %s250, 1
      %p254 = scmp.eq.s32.totalorder %s29, 1
      %p255 = scmp.ne.s32.totalorder %s250, %s252
      %p256 = scmp.eq.s32.totalorder %s29, 0
      %p257 = por %p255, %p256
      %p258 = scmp.ne.s32.totalorder %s250, %s252
      %p259 = scmp.eq.s32.totalorder %s34, 1
      %p260 = por %p258, %p259
      %p261 = scmp.ne.s32.totalorder %s252, %s253
      %p262 = scmp.eq.s32.totalorder %s34, 0
      %p263 = por %p261, %p262
      %p264 = scmp.ne.s32.totalorder %s252, %s253
      %p265 = scmp.eq.s32.totalorder %s35, 1
      %p266 = por %p264, %p265
      %p268 = scmp.ne.s32.totalorder %s253, %s267
      %p269 = scmp.eq.s32.totalorder %s35, 0
      %p270 = por %p268, %p269
      %s272 = sadd.s32 %s271, 1
      %p275 = scmp.eq.s32.totalorder %s29, 1
      %p276 = scmp.ne.s32.totalorder %s271, %s273
      %p277 = scmp.eq.s32.totalorder %s29, 0
      %p278 = por %p276, %p277
      %p279 = scmp.ne.s32.totalorder %s271, %s273
      %p280 = scmp.eq.s32.totalorder %s34, 1
      %p281 = por %p279, %p280
      %p282 = scmp.ne.s32.totalorder %s273, %s274
      %p283 = scmp.eq.s32.totalorder %s34, 0
      %p284 = por %p282, %p283
      %p285 = scmp.ne.s32.totalorder %s273, %s274
      %p286 = scmp.eq.s32.totalorder %s35, 1
      %p287 = por %p285, %p286
      %p289 = scmp.ne.s32.totalorder %s274, %s288
      %p290 = scmp.eq.s32.totalorder %s35, 0
      %p291 = por %p289, %p290
      %s293 = sadd.s32 %s292, 1
      %p296 = scmp.eq.s32.totalorder %s29, 1
      %p297 = scmp.ne.s32.totalorder %s292, %s294
      %p298 = scmp.eq.s32.totalorder %s29, 0
      %p299 = por %p297, %p298
      %p300 = scmp.ne.s32.totalorder %s292, %s294
      %p301 = scmp.eq.s32.totalorder %s34, 1
      %p302 = por %p300, %p301
      %p303 = scmp.ne.s32.totalorder %s294, %s295
      %p304 = scmp.eq.s32.totalorder %s34, 0
      %p305 = por %p303, %p304
      %p306 = scmp.ne.s32.totalorder %s294, %s295
      %p307 = scmp.eq.s32.totalorder %s35, 1
      %p308 = por %p306, %p307
      %p310 = scmp.ne.s32.totalorder %s295, %s309
      %p311 = scmp.eq.s32.totalorder %s35, 0
      %p312 = por %p310, %p311
      %s314 = sadd.s32 %s313, 1
      %p317 = scmp.eq.s32.totalorder %s29, 1
      %p318 = scmp.ne.s32.totalorder %s313, %s315
      %p319 = scmp.eq.s32.totalorder %s29, 0
      %p320 = por %p318, %p319
      %p321 = scmp.ne.s32.totalorder %s313, %s315
      %p322 = scmp.eq.s32.totalorder %s34, 1
      %p323 = por %p321, %p322
      %p324 = scmp.ne.s32.totalorder %s315, %s316
      %p325 = scmp.eq.s32.totalorder %s34, 0
      %p326 = por %p324, %p325
      %p327 = scmp.ne.s32.totalorder %s315, %s316
      %p328 = scmp.eq.s32.totalorder %s35, 1
      %p329 = por %p327, %p328
      %p331 = scmp.ne.s32.totalorder %s316, %s330
      %p332 = scmp.eq.s32.totalorder %s35, 0
      %p333 = por %p331, %p332
      %s335 = sadd.s32 %s334, 1
      %p338 = scmp.eq.s32.totalorder %s29, 1
      %p339 = scmp.ne.s32.totalorder %s334, %s336
      %p340 = scmp.eq.s32.totalorder %s29, 0
      %p341 = por %p339, %p340
      %p342 = scmp.ne.s32.totalorder %s334, %s336
      %p343 = scmp.eq.s32.totalorder %s34, 1
      %p344 = por %p342, %p343
      %p345 = scmp.ne.s32.totalorder %s336, %s337
      %p346 = scmp.eq.s32.totalorder %s34, 0
      %p347 = por %p345, %p346
      %p348 = scmp.ne.s32.totalorder %s336, %s337
      %p349 = scmp.eq.s32.totalorder %s35, 1
      %p350 = por %p348, %p349
      %p352 = scmp.ne.s32.totalorder %s337, %s351
      %p353 = scmp.eq.s32.totalorder %s35, 0
      %p354 = por %p352, %p353
      %s356 = sadd.s32 %s355, 1
      %p359 = scmp.eq.s32.totalorder %s29, 1
      %p360 = scmp.ne.s32.totalorder %s355, %s357
      %p361 = scmp.eq.s32.totalorder %s29, 0
      %p362 = por %p360, %p361
      %p363 = scmp.ne.s32.totalorder %s355, %s357
      %p364 = scmp.eq.s32.totalorder %s34, 1
      %p365 = por %p363, %p364
      %p366 = scmp.ne.s32.totalorder %s357, %s358
      %p367 = scmp.eq.s32.totalorder %s34, 0
      %p368 = por %p366, %p367
      %p369 = scmp.ne.s32.totalorder %s357, %s358
      %p370 = scmp.eq.s32.totalorder %s35, 1
      %p371 = por %p369, %p370
      %p373 = scmp.ne.s32.totalorder %s358, %s372
      %p374 = scmp.eq.s32.totalorder %s35, 0
      %p375 = por %p373, %p374
      %s377 = sadd.s32 %s376, 1
      %p380 = scmp.eq.s32.totalorder %s29, 1
      %p381 = scmp.ne.s32.totalorder %s376, %s378
      %p382 = scmp.eq.s32.totalorder %s29, 0
      %p383 = por %p381, %p382
      %p384 = scmp.ne.s32.totalorder %s376, %s378
      %p385 = scmp.eq.s32.totalorder %s34, 1
      %p386 = por %p384, %p385
      %p387 = scmp.ne.s32.totalorder %s378, %s379
      %p388 = scmp.eq.s32.totalorder %s34, 0
      %p389 = por %p387, %p388
      %p390 = scmp.ne.s32.totalorder %s378, %s379
      %p391 = scmp.eq.s32.totalorder %s35, 1
      %p392 = por %p390, %p391
      %p394 = scmp.ne.s32.totalorder %s379, %s393
      %p395 = scmp.eq.s32.totalorder %s35, 0
      %p396 = por %p394, %p395
      %s398 = sadd.s32 %s397, 1
      %p401 = scmp.eq.s32.totalorder %s29, 1
      %p402 = scmp.ne.s32.totalorder %s397, %s399
      %p403 = scmp.eq.s32.totalorder %s29, 0
      %p404 = por %p402, %p403
      %p405 = scmp.ne.s32.totalorder %s397, %s399
      %p406 = scmp.eq.s32.totalorder %s34, 1
      %p407 = por %p405, %p406
      %p408 = scmp.ne.s32.totalorder %s399, %s400
      %p409 = scmp.eq.s32.totalorder %s34, 0
      %p410 = por %p408, %p409
      %p411 = scmp.ne.s32.totalorder %s399, %s400
      %p412 = scmp.eq.s32.totalorder %s35, 1
      %p413 = por %p411, %p412
      %p415 = scmp.ne.s32.totalorder %s400, %s414
      %p416 = scmp.eq.s32.totalorder %s35, 0
      %p417 = por %p415, %p416
      %s419 = sadd.s32 %s418, 1
      %p422 = scmp.eq.s32.totalorder %s29, 1
      %p423 = scmp.ne.s32.totalorder %s418, %s420
      %p424 = scmp.eq.s32.totalorder %s29, 0
      %p425 = por %p423, %p424
      %p426 = scmp.ne.s32.totalorder %s418, %s420
      %p427 = scmp.eq.s32.totalorder %s34, 1
      %p428 = por %p426, %p427
      %p429 = scmp.ne.s32.totalorder %s420, %s421
      %p430 = scmp.eq.s32.totalorder %s34, 0
      %p431 = por %p429, %p430
      %p432 = scmp.ne.s32.totalorder %s420, %s421
      %p433 = scmp.eq.s32.totalorder %s35, 1
      %p434 = por %p432, %p433
      %p436 = scmp.ne.s32.totalorder %s421, %s435
      %p437 = scmp.eq.s32.totalorder %s35, 0
      %p438 = por %p436, %p437
      %s439 = ssub.s32 %s36, %s48
      %s440 = ssub.s32 %s37, %s44
      %s441 = sor.u32 %s439, %s440
      %p442 = scmp.eq.s32.totalorder %s441, 0
      %s444 = sadd.s32 %s443, 1
      %s445 = scalar_select %p442, %s443, %s444
      %p448 = pneg %p442
      %p449 = scmp.eq.s32.totalorder %s29, 1
      %p450 = por %p448, %p449
      %p451 = scmp.ne.s32.totalorder %s443, %s446
      %p452 = scmp.eq.s32.totalorder %s29, 0
      %p453 = por %p451, %p452
      %p454 = scmp.ne.s32.totalorder %s443, %s446
      %p455 = scmp.eq.s32.totalorder %s34, 1
      %p456 = por %p454, %p455
      %p457 = scmp.ne.s32.totalorder %s446, %s447
      %p458 = scmp.eq.s32.totalorder %s34, 0
      %p459 = por %p457, %p458
      %p460 = scmp.ne.s32.totalorder %s446, %s447
      %p461 = scmp.eq.s32.totalorder %s35, 1
      %p462 = por %p460, %p461
      %p464 = scmp.ne.s32.totalorder %s447, %s463
      %p465 = scmp.eq.s32.totalorder %s35, 0
      %p466 = por %p464, %p465
      %p467 = scmp.le.s32.totalorder 1, %s29
      %p468 = scmp.lt.s32.totalorder %s29, 3
      %p469 = pnand %p467, %p468
      %p470 = pneg %p469
      // Predicated region
      $region9: #{tpu_custom_call.1} parent=5 // pred_check
        _
      $region10: #{tpu_custom_call.1} parent=5 // pred_check_branch
        %472 = sbr.rel (%p469) target = $region12
      $region11: #{tpu_custom_call.1} parent=5 // pred_region
        %s473 = ssub.s32 %s29, 1
        // Predicated region
        $region13: #{tpu_custom_call.1} parent=11 // pred_check
          %p474 = pneg %p116
        $region14: #{tpu_custom_call.1} parent=11 // pred_check_branch
          %476 = sbr.rel (%p474) target = $region16
        $region15: #{tpu_custom_call.1} parent=11 // pred_region
          _
        $region16: #{tpu_custom_call.1} parent=11 // pred_fallthru
          _
        // Predicated region
        $region17: #{tpu_custom_call.1} parent=11 // pred_check
          %p477 = pneg %p137
        $region18: #{tpu_custom_call.1} parent=11 // pred_check_branch
          %479 = sbr.rel (%p477) target = $region20
        $region19: #{tpu_custom_call.1} parent=11 // pred_region
          _
        $region20: #{tpu_custom_call.1} parent=11 // pred_fallthru
          _
        // Predicated region
        $region21: #{tpu_custom_call.1} parent=11 // pred_check
          %p480 = pneg %p158
        $region22: #{tpu_custom_call.1} parent=11 // pred_check_branch
          %482 = sbr.rel (%p480) target = $region24
        $region23: #{tpu_custom_call.1} parent=11 // pred_region
          _
        $region24: #{tpu_custom_call.1} parent=11 // pred_fallthru
          _
        // Predicated region
        $region25: #{tpu_custom_call.1} parent=11 // pred_check
          %p483 = pneg %p179
        $region26: #{tpu_custom_call.1} parent=11 // pred_check_branch
          %485 = sbr.rel (%p483) target = $region28
        $region27: #{tpu_custom_call.1} parent=11 // pred_region
          _
        $region28: #{tpu_custom_call.1} parent=11 // pred_fallthru
          _
        // Predicated region
        $region29: #{tpu_custom_call.1} parent=11 // pred_check
          %p486 = pneg %p200
        $region30: #{tpu_custom_call.1} parent=11 // pred_check_branch
          %488 = sbr.rel (%p486) target = $region32
        $region31: #{tpu_custom_call.1} parent=11 // pred_region
          %s490 = ssub.s32 256, 256
          %491 = vsyncadd [#allocation3], %s490
          %s492 = sshll.u32 [#allocation2], 4
          %s493 = int_to_ptr.vmem [resolvable:$true] %s492
          %498 = dma.hbm_to_vmem [thread:$0]  %s6, 256, %s493, [#allocation3], 64, 64, 4
        $region32: #{tpu_custom_call.1} parent=11 // pred_fallthru
          _
        // Predicated region
        $region33: #{tpu_custom_call.1} parent=11 // pred_check
          %p499 = pneg %p221
        $region34: #{tpu_custom_call.1} parent=11 // pred_check_branch
          %501 = sbr.rel (%p499) target = $region36
        $region35: #{tpu_custom_call.1} parent=11 // pred_region
          _
        $region36: #{tpu_custom_call.1} parent=11 // pred_fallthru
          _
        // Predicated region
        $region37: #{tpu_custom_call.1} parent=11 // pred_check
          %p502 = pneg %p242
        $region38: #{tpu_custom_call.1} parent=11 // pred_check_branch
          %504 = sbr.rel (%p502) target = $region40
        $region39: #{tpu_custom_call.1} parent=11 // pred_region
          %s506 = ssub.s32 256, 256
          %507 = vsyncadd [#allocation6], %s506
          %s508 = sshll.u32 [#allocation5], 4
          %s509 = int_to_ptr.vmem [resolvable:$true] %s508
          %514 = dma.hbm_to_vmem [thread:$0]  %s8, 256, %s509, [#allocation6], 64, 64, 4
        $region40: #{tpu_custom_call.1} parent=11 // pred_fallthru
          _
        // Predicated region
        $region41: #{tpu_custom_call.1} parent=11 // pred_check
          %p515 = pneg %p263
        $region42: #{tpu_custom_call.1} parent=11 // pred_check_branch
          %517 = sbr.rel (%p515) target = $region44
        $region43: #{tpu_custom_call.1} parent=11 // pred_region
          _
        $region44: #{tpu_custom_call.1} parent=11 // pred_fallthru
          _
        // Predicated region
        $region45: #{tpu_custom_call.1} parent=11 // pred_check
          %p518 = pneg %p284
        $region46: #{tpu_custom_call.1} parent=11 // pred_check_branch
          %520 = sbr.rel (%p518) target = $region48
        $region47: #{tpu_custom_call.1} parent=11 // pred_region
          %s522 = ssub.s32 256, 256
          %523 = vsyncadd [#allocation6], %s522
          %s524 = sshll.u32 [#allocation7], 4
          %s525 = int_to_ptr.vmem [resolvable:$true] %s524
          %530 = dma.hbm_to_vmem [thread:$0]  %s10, 256, %s525, [#allocation6], 64, 64, 4
        $region48: #{tpu_custom_call.1} parent=11 // pred_fallthru
          _
        // Predicated region
        $region49: #{tpu_custom_call.1} parent=11 // pred_check
          %p531 = pneg %p305
        $region50: #{tpu_custom_call.1} parent=11 // pred_check_branch
          %533 = sbr.rel (%p531) target = $region52
        $region51: #{tpu_custom_call.1} parent=11 // pred_region
          _
        $region52: #{tpu_custom_call.1} parent=11 // pred_fallthru
          _
        // Predicated region
        $region53: #{tpu_custom_call.1} parent=11 // pred_check
          %p534 = pneg %p326
        $region54: #{tpu_custom_call.1} parent=11 // pred_check_branch
          %536 = sbr.rel (%p534) target = $region56
        $region55: #{tpu_custom_call.1} parent=11 // pred_region
          _
        $region56: #{tpu_custom_call.1} parent=11 // pred_fallthru
          _
        // Predicated region
        $region57: #{tpu_custom_call.1} parent=11 // pred_check
          %p537 = pneg %p347
        $region58: #{tpu_custom_call.1} parent=11 // pred_check_branch
          %539 = sbr.rel (%p537) target = $region60
        $region59: #{tpu_custom_call.1} parent=11 // pred_region
          _
        $region60: #{tpu_custom_call.1} parent=11 // pred_fallthru
          _
        // Predicated region
        $region61: #{tpu_custom_call.1} parent=11 // pred_check
          %p540 = pneg %p368
        $region62: #{tpu_custom_call.1} parent=11 // pred_check_branch
          %542 = sbr.rel (%p540) target = $region64
        $region63: #{tpu_custom_call.1} parent=11 // pred_region
          _
        $region64: #{tpu_custom_call.1} parent=11 // pred_fallthru
          _
        // Predicated region
        $region65: #{tpu_custom_call.1} parent=11 // pred_check
          %p543 = pneg %p389
        $region66: #{tpu_custom_call.1} parent=11 // pred_check_branch
          %545 = sbr.rel (%p543) target = $region68
        $region67: #{tpu_custom_call.1} parent=11 // pred_region
          _
        $region68: #{tpu_custom_call.1} parent=11 // pred_fallthru
          _
        // Predicated region
        $region69: #{tpu_custom_call.1} parent=11 // pred_check
          %p546 = pneg %p410
        $region70: #{tpu_custom_call.1} parent=11 // pred_check_branch
          %548 = sbr.rel (%p546) target = $region72
        $region71: #{tpu_custom_call.1} parent=11 // pred_region
          _
        $region72: #{tpu_custom_call.1} parent=11 // pred_fallthru
          _
        // Predicated region
        $region73: #{tpu_custom_call.1} parent=11 // pred_check
          %p549 = pneg %p431
        $region74: #{tpu_custom_call.1} parent=11 // pred_check_branch
          %551 = sbr.rel (%p549) target = $region76
        $region75: #{tpu_custom_call.1} parent=11 // pred_region
          _
        $region76: #{tpu_custom_call.1} parent=11 // pred_fallthru
          _
      $region12: #{tpu_custom_call.1} parent=5 // pred_fallthru
        _
      %p552 = scmp.lt.s32.totalorder %s29, 2
      // Predicated region
      $region77: #{tpu_custom_call.1} parent=5 // pred_check
        %p553 = pneg %p552
      $region78: #{tpu_custom_call.1} parent=5 // pred_check_branch
        %555 = sbr.rel (%p553) target = $region80
      $region79: #{tpu_custom_call.1} parent=5 // pred_region
        // Predicated region
        $region81: #{tpu_custom_call.1} parent=79 // pred_check
          %p556 = pneg %p61
        $region82: #{tpu_custom_call.1} parent=79 // pred_check_branch
          %558 = sbr.rel (%p556) target = $region84
        $region83: #{tpu_custom_call.1} parent=79 // pred_region
          %p559 = scmp.lt.s32.totalorder %s36, 1
          %s560 = scalar_select %p559, %s36, 1
          %s561 = smul.addr %s560, 8
          %s562 = scalar_lea.vmem %s0, %s561
        $region84: #{tpu_custom_call.1} parent=79 // pred_fallthru
          _
        // Predicated region
        $region85: #{tpu_custom_call.1} parent=79 // pred_check
          %p563 = pneg %p89
        $region86: #{tpu_custom_call.1} parent=79 // pred_check_branch
          %565 = sbr.rel (%p563) target = $region88
        $region87: #{tpu_custom_call.1} parent=79 // pred_region
          %p566 = scmp.lt.s32.totalorder %s36, 1
          %s567 = scalar_select %p566, %s36, 1
          %p568 = scmp.lt.s32.totalorder %s37, 0
          %s569 = scalar_select %p568, %s37, 0
          %s570 = sadd.s32 %s569, %s567
          %s571 = smul.addr %s570, 8
          %s572 = scalar_lea.vmem %s1, %s571
        $region88: #{tpu_custom_call.1} parent=79 // pred_fallthru
          _
      $region80: #{tpu_custom_call.1} parent=5 // pred_fallthru
        _
      %p573 = scmp.le.s32.totalorder 1, %s29
      %p574 = scmp.lt.s32.totalorder %s29, 3
      %p575 = pnand %p573, %p574
      %p576 = pneg %p575
      // Predicated region
      $region89: #{tpu_custom_call.1} parent=5 // pred_check
        _
      $region90: #{tpu_custom_call.1} parent=5 // pred_check_branch
        %578 = sbr.rel (%p575) target = $region92
      $region91: #{tpu_custom_call.1} parent=5 // pred_region
        %s579 = ssub.s32 %s29, 1
        // Predicated region
        $region93: #{tpu_custom_call.1} parent=91 // pred_check
          %p580 = pneg %p200
        $region94: #{tpu_custom_call.1} parent=91 // pred_check_branch
          %582 = sbr.rel (%p580) target = $region96
        $region95: #{tpu_custom_call.1} parent=91 // pred_region
          %583 = dma.done [#allocation3], 256
        $region96: #{tpu_custom_call.1} parent=91 // pred_fallthru
          _
        // Predicated region
        $region97: #{tpu_custom_call.1} parent=91 // pred_check
          %p584 = pneg %p242
        $region98: #{tpu_custom_call.1} parent=91 // pred_check_branch
          %586 = sbr.rel (%p584) target = $region100
        $region99: #{tpu_custom_call.1} parent=91 // pred_region
          %587 = dma.done [#allocation6], 256
        $region100: #{tpu_custom_call.1} parent=91 // pred_fallthru
          _
        // Predicated region
        $region101: #{tpu_custom_call.1} parent=91 // pred_check
          %p588 = pneg %p284
        $region102: #{tpu_custom_call.1} parent=91 // pred_check_branch
          %590 = sbr.rel (%p588) target = $region104
        $region103: #{tpu_custom_call.1} parent=91 // pred_region
          %591 = dma.done [#allocation6], 256
        $region104: #{tpu_custom_call.1} parent=91 // pred_fallthru
          _
        %p592 = scmp.lt.s32.totalorder %s38, 1
        %s593 = scalar_select %p592, %s38, 1
        %s594 = smul.addr %s593, 8
        %s595 = scalar_lea.vmem %s0, %s594
        %p596 = pneg %p67
        %p597 = pneg %p64
        %p598 = scmp.lt.s32.totalorder %s38, 1
        %s599 = scalar_select %p598, %s38, 1
        %p600 = scmp.lt.s32.totalorder %s39, 0
        %s601 = scalar_select %p600, %s39, 0
        %s602 = sadd.s32 %s601, %s599
        %s603 = smul.addr %s602, 8
        %s604 = scalar_lea.vmem %s1, %s603
        %p605 = pneg %p95
        %p606 = pneg %p92
        %p607 = pneg %p116
        %p608 = pneg %p113
        %p609 = pneg %p137
        %p610 = pneg %p134
        %p611 = pneg %p158
        %p612 = pneg %p155
        %p613 = pneg %p179
        %p614 = pneg %p176
        %p615 = pneg %p200
        %p616 = pneg %p197
        %p617 = pneg %p221
        %p618 = pneg %p218
        %p619 = pneg %p242
        %p620 = pneg %p239
        %p621 = pneg %p263
        %p622 = pneg %p260
        %p623 = pneg %p284
        %p624 = pneg %p281
        %p625 = pneg %p305
        %p626 = pneg %p302
        %p627 = pneg %p326
        %p628 = pneg %p323
        %p629 = pneg %p347
        %p630 = pneg %p344
        %p631 = pneg %p368
        %p632 = pneg %p365
        %p633 = pneg %p389
        %p634 = pneg %p386
        %p635 = pneg %p410
        %p636 = pneg %p407
        %p637 = pneg %p431
        %p638 = pneg %p428
        %p639 = pneg %p459
        %p640 = pneg %p456
        %s641 = sand.u32 %s446, 1
        %s642 = scalar_lea.sflag [#allocation4], %s641
        %s643 = sand.u32 %s446, 1
        %s644 = smul.addr %s643, 8
        %s645 = scalar_lea.vmem [#allocation8], %s644
        %p646 = scmp.lt.s32.totalorder %s38, 1
        %s647 = scalar_select %p646, %s38, 1
        %s648 = smul.addr %s647, 8
        %s649 = scalar_lea.vmem %s0, %s648
        %p650 = scmp.lt.s32.totalorder %s38, 1
        %s651 = scalar_select %p650, %s38, 1
        %p652 = scmp.lt.s32.totalorder %s39, 0
        %s653 = scalar_select %p652, %s39, 0
        %s654 = sadd.s32 %s653, %s651
        %s655 = smul.addr %s654, 8
        %s656 = scalar_lea.vmem %s1, %s655
        %v658 = vld [vmem:[%s649] sm:$0xff]
        %v659 = vld [vmem:[%s656] sm:$0xff]
        %s660 = smul.u32 %s39, 8
        %v661 = vld [vmem:[%s2] sm:$0x1]
        %v662 = vld [vmem:[%s3] sm:$0x1]
        %vm663 = vcmask 261120
        %v664 = vsel %vm663, %v658, 0.0
        %665 = vadd.xlane.f32.xlu0 %v664
        %v666 = vpop.xlane.xlu0 %665
        %v667 = vrcp.pop 32.0
        %v668 = vmul.f32 %v666, %v667
        %v669 = vsub.f32 %v658, %v668
        %v670 = vmul.f32 %v669, %v669
        %v671 = vsel %vm663, %v670, 0.0
        %672 = vadd.xlane.f32.xlu0 %v671
        %v673 = vpop.xlane.xlu0 %672
        %v674 = vmul.f32 %v673, %v667
        %v675 = vadd.f32 %v674, 1e-05
        %v676 = vrsqrt.pop %v675
        %v677 = vmul.f32 %v669, %v676
        %v679 = vlaneseq
        %v680 = vshrl.u32 %v679, 7
        %v681 = vsub.s32 0, %v680
        %v682 = vrot.slane %v661, %v681
        %v684 = vmul.f32 %v677, %v682
        %v686 = vlaneseq
        %v687 = vshrl.u32 %v686, 7
        %v688 = vsub.s32 0, %v687
        %v689 = vrot.slane %v662, %v688
        %v691 = vadd.f32 %v684, %v689
        %v692 = vpack.c.bf16 %v691, %v691
        %v693 = vsel %vm663, %v659, 0.0
        %694 = vadd.xlane.f32.xlu0 %v693
        %v695 = vpop.xlane.xlu0 %694
        %v696 = vmul.f32 %v695, %v667
        %v697 = vsub.f32 %v659, %v696
        %v698 = vmul.f32 %v697, %v697
        %v699 = vsel %vm663, %v698, 0.0
        %700 = vadd.xlane.f32.xlu0 %v699
        %v701 = vpop.xlane.xlu0 %700
        %v702 = vmul.f32 %v701, %v667
        %v703 = vadd.f32 %v702, 1e-05
        %v704 = vrsqrt.pop %v703
        %v705 = vmul.f32 %v697, %v704
        %v706 = vmul.f32 %v705, %v682
        %v707 = vadd.f32 %v706, %v689
        %v708 = vpack.c.bf16 %v707, %v707
        %v709 = vld [vmem:[%s4] sm:$0xf]
        %v710 = vld [vmem:[%s4 + $0x4] sm:$0xf]
        %v711 = vld [vmem:[%s4 + $0x8] sm:$0xf]
        %v712 = vld [vmem:[%s4 + $0xc] sm:$0xf]
        %v713 = vld [vmem:[%s5] sm:$0x1]
        %v715 = vlaneseq
        %v716 = vshrl.u32 %v715, 7
        %v717 = vsub.s32 0, %v716
        %v718 = vrot.slane %v713, %v717
        %v724 = vunpack.c.l.b16 %v709
        %v725 = vunpack.c.l.b16 %v710
        %v726 = vunpack.c.l.b16 %v711
        %v727 = vunpack.c.l.b16 %v712
        %v728 = vpack.c.b16 %v725, %v724
        %v729 = vpack.c.b16 %v727, %v726
        %v733 = vsel %vm663, %v708, 0
        %735 = vmatprep.subr.bf16.mxu0 0
        %736 = vmatpush1.bf16.msra.mxu0 0
        %737 = vmatprep.subr.bf16.mxu0 0
        %738 = vmatpush1.bf16.msra.mxu0 0
        %739 = vmatprep.subr.bf16.mxu0 0
        %740 = vmatpush1.bf16.msra.mxu0 0
        %741 = vmatprep.subr.bf16.mxu0 0
        %742 = vmatpush1.bf16.msra.mxu0 0
        %743 = vmatprep.subr.bf16.mxu0 0
        %744 = vmatpush1.bf16.msra.mxu0 0
        %745 = vmatprep.subr.bf16.mxu0 0
        %746 = vmatpush1.bf16.msra.mxu0 0
        %747 = vmatprep.subr.bf16.mxu0 0
        %748 = vmatpush1.bf16.msra.mxu0 %v729
        %749 = vmatprep.subr.bf16.mxu0 0
        %750 = vmatpush1.bf16.msra.mxu0 %v728
        %751 = vmatprep.subr.bf16.mxu0 0
        %752 = vmatpush2.bf16.msra.mxu0 0
        %753 = vmatprep.subr.bf16.mxu0 0
        %754 = vmatpush2.bf16.msra.mxu0 0
        %755 = vmatprep.subr.bf16.mxu0 0
        %756 = vmatpush2.bf16.msra.mxu0 0
        %757 = vmatprep.subr.bf16.mxu0 0
        %758 = vmatpush2.bf16.msra.mxu0 0
        %759 = vmatprep.subr.bf16.mxu0 0
        %760 = vmatpush2.bf16.msra.mxu0 0
        %761 = vmatprep.subr.bf16.mxu0 0
        %762 = vmatpush2.bf16.msra.mxu0 0
        %763 = vmatprep.subr.bf16.mxu0 0
        %764 = vmatpush2.bf16.msra.mxu0 0
        %765 = vmatprep.subr.bf16.mxu0 0
        %766 = vmatpush2.bf16.msra.mxu0 0
        %767 = vmatprep.mubr.bf16.mxu0 0
        %768 = vmatmul.mubr.bf16.gmra.mxu0 %v733
        %v769 = vpop.f32.mrf.mxu0
        %v770 = vadd.f32 %v718, %v769
        %v771 = vpop.f32.mrf.mxu0
        %v772 = vpop.f32.mrf.mxu0
        %v773 = vpop.f32.mrf.mxu0
        %774 = vdwg.mxu0
        %v775 = vld [vmem:[#allocation2] sm:$0xf]
        %v776 = vld [vmem:[#allocation2 + $0x4] sm:$0xf]
        %v777 = vld [vmem:[#allocation2 + $0x8] sm:$0xf]
        %v778 = vld [vmem:[#allocation2 + $0xc] sm:$0xf]
        %v779 = vld [vmem:[%s7] sm:$0x1]
        %v781 = vlaneseq
        %v782 = vshrl.u32 %v781, 7
        %v783 = vsub.s32 0, %v782
        %v784 = vrot.slane %v779, %v783
        %v790 = vunpack.c.l.b16 %v775
        %v791 = vunpack.c.l.b16 %v776
        %v792 = vunpack.c.l.b16 %v777
        %v793 = vunpack.c.l.b16 %v778
        %v794 = vpack.c.b16 %v791, %v790
        %v795 = vpack.c.b16 %v793, %v792
        %v799 = vsel %vm663, %v692, 0
        %801 = vmatprep.subr.bf16.mxu0 0
        %802 = vmatpush1.bf16.msra.mxu0 0
        %803 = vmatprep.subr.bf16.mxu0 0
        %804 = vmatpush1.bf16.msra.mxu0 0
        %805 = vmatprep.subr.bf16.mxu0 0
        %806 = vmatpush1.bf16.msra.mxu0 0
        %807 = vmatprep.subr.bf16.mxu0 0
        %808 = vmatpush1.bf16.msra.mxu0 0
        %809 = vmatprep.subr.bf16.mxu0 0
        %810 = vmatpush1.bf16.msra.mxu0 0
        %811 = vmatprep.subr.bf16.mxu0 0
        %812 = vmatpush1.bf16.msra.mxu0 0
        %813 = vmatprep.subr.bf16.mxu0 0
        %814 = vmatpush1.bf16.msra.mxu0 %v795
        %815 = vmatprep.subr.bf16.mxu0 0
        %816 = vmatpush1.bf16.msra.mxu0 %v794
        %817 = vmatprep.subr.bf16.mxu0 0
        %818 = vmatpush2.bf16.msra.mxu0 0
        %819 = vmatprep.subr.bf16.mxu0 0
        %820 = vmatpush2.bf16.msra.mxu0 0
        %821 = vmatprep.subr.bf16.mxu0 0
        %822 = vmatpush2.bf16.msra.mxu0 0
        %823 = vmatprep.subr.bf16.mxu0 0
        %824 = vmatpush2.bf16.msra.mxu0 0
        %825 = vmatprep.subr.bf16.mxu0 0
        %826 = vmatpush2.bf16.msra.mxu0 0
        %827 = vmatprep.subr.bf16.mxu0 0
        %828 = vmatpush2.bf16.msra.mxu0 0
        %829 = vmatprep.subr.bf16.mxu0 0
        %830 = vmatpush2.bf16.msra.mxu0 0
        %831 = vmatprep.subr.bf16.mxu0 0
        %832 = vmatpush2.bf16.msra.mxu0 0
        %833 = vmatprep.mubr.bf16.mxu0 0
        %834 = vmatmul.mubr.bf16.gmra.mxu0 %v799
        %v835 = vpop.f32.mrf.mxu0
        %v836 = vadd.f32 %v784, %v835
        %v837 = vpop.f32.mrf.mxu0
        %v838 = vpop.f32.mrf.mxu0
        %v839 = vpop.f32.mrf.mxu0
        %840 = vdwg.mxu0
        %v841 = vlaneseq
        %v842 = vshrl.u32 %v841, 7
        %v843 = vstv %s660
        %v844 = vadd.s32 %v842, %v843
        %v845 = vlaneseq
        %v846 = vand.u32 %v845, 127
        %vm847 = vcmp.ge.s32.totalorder %v844, %v846
        %v848 = vpack.c.bf16 %v770, %v770
        %v849 = vpack.c.bf16 %v836, %v836
        %vm850 = vcmask 64512
        %v852 = vsel %vm850, %v848, 0
        %v855 = vsel %vm850, %v849, 0
        %857 = vmatprep.subr.bf16.mxu0 0
        %858 = vmatpush1.bf16.xpose.msra.mxu0 0
        %859 = vmatprep.subr.bf16.mxu0 0
        %860 = vmatpush1.bf16.xpose.msra.mxu0 0
        %861 = vmatprep.subr.bf16.mxu0 0
        %862 = vmatpush1.bf16.xpose.msra.mxu0 0
        %863 = vmatprep.subr.bf16.mxu0 0
        %864 = vmatpush1.bf16.xpose.msra.mxu0 0
        %865 = vmatprep.subr.bf16.mxu0 0
        %866 = vmatpush1.bf16.xpose.msra.mxu0 0
        %867 = vmatprep.subr.bf16.mxu0 0
        %868 = vmatpush1.bf16.xpose.msra.mxu0 0
        %869 = vmatprep.subr.bf16.mxu0 0
        %870 = vmatpush1.bf16.xpose.msra.mxu0 0
        %871 = vmatprep.subr.bf16.mxu0 0
        %872 = vmatpush1.bf16.xpose.msra.mxu0 %v855
        %873 = vmatprep.subr.bf16.mxu0 0
        %874 = vmatpush2.bf16.xpose.msra.mxu0 0
        %875 = vmatprep.subr.bf16.mxu0 0
        %876 = vmatpush2.bf16.xpose.msra.mxu0 0
        %877 = vmatprep.subr.bf16.mxu0 0
        %878 = vmatpush2.bf16.xpose.msra.mxu0 0
        %879 = vmatprep.subr.bf16.mxu0 0
        %880 = vmatpush2.bf16.xpose.msra.mxu0 0
        %881 = vmatprep.subr.bf16.mxu0 0
        %882 = vmatpush2.bf16.xpose.msra.mxu0 0
        %883 = vmatprep.subr.bf16.mxu0 0
        %884 = vmatpush2.bf16.xpose.msra.mxu0 0
        %885 = vmatprep.subr.bf16.mxu0 0
        %886 = vmatpush2.bf16.xpose.msra.mxu0 0
        %887 = vmatprep.subr.bf16.mxu0 0
        %888 = vmatpush2.bf16.xpose.msra.mxu0 0
        %889 = vmatprep.mubr.bf16.mxu0 0
        %890 = vmatmul.mubr.bf16.gmra.mxu0 %v852
        %v891 = vpop.f32.mrf.mxu0
        %v892 = vadd.f32 0.0, %v891
        %v893 = vpop.f32.mrf.mxu0
        %v894 = vpop.f32.mrf.mxu0
        %v895 = vpop.f32.mrf.mxu0
        %896 = vdwg.mxu0
        %v897 = vsel %vm847, %v892, -1e+30
        %v898 = vsel %vm850, %v897, -inf
        %899 = vmax.xlane.f32.xlu0 %v898
        %v900 = vpop.xlane.xlu0 %899
        %v901 = vsub.f32 %v897, %v900
        %v902 = vmul.f32 %v901, 1.442695
        %v903 = vpow.pop %v902
        %v904 = vsel %vm850, %v903, 0.0
        %905 = vadd.xlane.f32.xlu0 %v904
        %v906 = vpop.xlane.xlu0 %905
        %v907 = vrcp.pop %v906
        %v908 = vmul.f32 %v903, %v907
        %v909 = vpack.c.bf16 %v908, %v908
        %911 = vrot.lane.b32.xlu0 %v849, 96
        %v912 = vpop.permute.xlu0 %911
        %v914 = vsel %vm850, %v909, 0
        %vm916 = vcmask 1043456
        %v918 = vsel %vm916, %v912, 0
        %920 = vmatprep.subr.bf16.mxu0 0
        %921 = vmatpush1.bf16.msra.mxu0 0
        %922 = vmatprep.subr.bf16.mxu0 0
        %923 = vmatpush1.bf16.msra.mxu0 0
        %924 = vmatprep.subr.bf16.mxu0 0
        %925 = vmatpush1.bf16.msra.mxu0 0
        %926 = vmatprep.subr.bf16.mxu0 0
        %927 = vmatpush1.bf16.msra.mxu0 0
        %928 = vmatprep.subr.bf16.mxu0 0
        %929 = vmatpush1.bf16.msra.mxu0 0
        %930 = vmatprep.subr.bf16.mxu0 0
        %931 = vmatpush1.bf16.msra.mxu0 0
        %932 = vmatprep.subr.bf16.mxu0 0
        %933 = vmatpush1.bf16.msra.mxu0 0
        %934 = vmatprep.subr.bf16.mxu0 0
        %935 = vmatpush1.bf16.msra.mxu0 %v918
        %936 = vmatprep.subr.bf16.mxu0 0
        %937 = vmatpush2.bf16.msra.mxu0 0
        %938 = vmatprep.subr.bf16.mxu0 0
        %939 = vmatpush2.bf16.msra.mxu0 0
        %940 = vmatprep.subr.bf16.mxu0 0
        %941 = vmatpush2.bf16.msra.mxu0 0
        %942 = vmatprep.subr.bf16.mxu0 0
        %943 = vmatpush2.bf16.msra.mxu0 0
        %944 = vmatprep.subr.bf16.mxu0 0
        %945 = vmatpush2.bf16.msra.mxu0 0
        %946 = vmatprep.subr.bf16.mxu0 0
        %947 = vmatpush2.bf16.msra.mxu0 0
        %948 = vmatprep.subr.bf16.mxu0 0
        %949 = vmatpush2.bf16.msra.mxu0 0
        %950 = vmatprep.subr.bf16.mxu0 0
        %951 = vmatpush2.bf16.msra.mxu0 0
        %952 = vmatprep.mubr.bf16.mxu0 0
        %953 = vmatmul.mubr.bf16.gmra.mxu0 %v914
        %v954 = vpop.f32.mrf.mxu0
        %v955 = vadd.f32 0.0, %v954
        %v956 = vpop.f32.mrf.mxu0
        %v957 = vpop.f32.mrf.mxu0
        %v958 = vpop.f32.mrf.mxu0
        %959 = vdwg.mxu0
        %v960 = vpack.c.bf16 %v955, %v955
        %v961 = vld [vmem:[#allocation5] sm:$0xf]
        %963 = vrot.lane.b32.xlu0 %v848, 120
        %v964 = vpop.permute.xlu0 %963
        %965 = vrot.lane.b32.xlu0 %v849, 120
        %v966 = vpop.permute.xlu0 %965
        %v968 = vsel %vm850, %v964, 0
        %v971 = vsel %vm850, %v966, 0
        %973 = vmatprep.subr.bf16.mxu0 0
        %974 = vmatpush1.bf16.xpose.msra.mxu0 0
        %975 = vmatprep.subr.bf16.mxu0 0
        %976 = vmatpush1.bf16.xpose.msra.mxu0 0
        %977 = vmatprep.subr.bf16.mxu0 0
        %978 = vmatpush1.bf16.xpose.msra.mxu0 0
        %979 = vmatprep.subr.bf16.mxu0 0
        %980 = vmatpush1.bf16.xpose.msra.mxu0 0
        %981 = vmatprep.subr.bf16.mxu0 0
        %982 = vmatpush1.bf16.xpose.msra.mxu0 0
        %983 = vmatprep.subr.bf16.mxu0 0
        %984 = vmatpush1.bf16.xpose.msra.mxu0 0
        %985 = vmatprep.subr.bf16.mxu0 0
        %986 = vmatpush1.bf16.xpose.msra.mxu0 0
        %987 = vmatprep.subr.bf16.mxu0 0
        %988 = vmatpush1.bf16.xpose.msra.mxu0 %v971
        %989 = vmatprep.subr.bf16.mxu0 0
        %990 = vmatpush2.bf16.xpose.msra.mxu0 0
        %991 = vmatprep.subr.bf16.mxu0 0
        %992 = vmatpush2.bf16.xpose.msra.mxu0 0
        %993 = vmatprep.subr.bf16.mxu0 0
        %994 = vmatpush2.bf16.xpose.msra.mxu0 0
        %995 = vmatprep.subr.bf16.mxu0 0
        %996 = vmatpush2.bf16.xpose.msra.mxu0 0
        %997 = vmatprep.subr.bf16.mxu0 0
        %998 = vmatpush2.bf16.xpose.msra.mxu0 0
        %999 = vmatprep.subr.bf16.mxu0 0
        %1000 = vmatpush2.bf16.xpose.msra.mxu0 0
        %1001 = vmatprep.subr.bf16.mxu0 0
        %1002 = vmatpush2.bf16.xpose.msra.mxu0 0
        %1003 = vmatprep.subr.bf16.mxu0 0
        %1004 = vmatpush2.bf16.xpose.msra.mxu0 0
        %1005 = vmatprep.mubr.bf16.mxu0 0
        %1006 = vmatmul.mubr.bf16.gmra.mxu0 %v968
        %v1007 = vpop.f32.mrf.mxu0
        %v1008 = vadd.f32 0.0, %v1007
        %v1009 = vpop.f32.mrf.mxu0
        %v1010 = vpop.f32.mrf.mxu0
        %v1011 = vpop.f32.mrf.mxu0
        %1012 = vdwg.mxu0
        %v1013 = vsel %vm847, %v1008, -1e+30
        %v1014 = vsel %vm850, %v1013, -inf
        %1015 = vmax.xlane.f32.xlu0 %v1014
        %v1016 = vpop.xlane.xlu0 %1015
        %v1017 = vsub.f32 %v1013, %v1016
        %v1018 = vmul.f32 %v1017, 1.442695
        %v1019 = vpow.pop %v1018
        %v1020 = vsel %vm850, %v1019, 0.0
        %1021 = vadd.xlane.f32.xlu0 %v1020
        %v1022 = vpop.xlane.xlu0 %1021
        %v1023 = vrcp.pop %v1022
        %v1024 = vmul.f32 %v1019, %v1023
        %v1025 = vpack.c.bf16 %v1024, %v1024
        %1026 = vrot.lane.b32.xlu0 %v849, 88
        %v1027 = vpop.permute.xlu0 %1026
        %v1029 = vsel %vm850, %v1025, 0
        %v1032 = vsel %vm916, %v1027, 0
        %1034 = vmatprep.subr.bf16.mxu0 0
        %1035 = vmatpush1.bf16.msra.mxu0 0
        %1036 = vmatprep.subr.bf16.mxu0 0
        %1037 = vmatpush1.bf16.msra.mxu0 0
        %1038 = vmatprep.subr.bf16.mxu0 0
        %1039 = vmatpush1.bf16.msra.mxu0 0
        %1040 = vmatprep.subr.bf16.mxu0 0
        %1041 = vmatpush1.bf16.msra.mxu0 0
        %1042 = vmatprep.subr.bf16.mxu0 0
        %1043 = vmatpush1.bf16.msra.mxu0 0
        %1044 = vmatprep.subr.bf16.mxu0 0
        %1045 = vmatpush1.bf16.msra.mxu0 0
        %1046 = vmatprep.subr.bf16.mxu0 0
        %1047 = vmatpush1.bf16.msra.mxu0 0
        %1048 = vmatprep.subr.bf16.mxu0 0
        %1049 = vmatpush1.bf16.msra.mxu0 %v1032
        %1050 = vmatprep.subr.bf16.mxu0 0
        %1051 = vmatpush2.bf16.msra.mxu0 0
        %1052 = vmatprep.subr.bf16.mxu0 0
        %1053 = vmatpush2.bf16.msra.mxu0 0
        %1054 = vmatprep.subr.bf16.mxu0 0
        %1055 = vmatpush2.bf16.msra.mxu0 0
        %1056 = vmatprep.subr.bf16.mxu0 0
        %1057 = vmatpush2.bf16.msra.mxu0 0
        %1058 = vmatprep.subr.bf16.mxu0 0
        %1059 = vmatpush2.bf16.msra.mxu0 0
        %1060 = vmatprep.subr.bf16.mxu0 0
        %1061 = vmatpush2.bf16.msra.mxu0 0
        %1062 = vmatprep.subr.bf16.mxu0 0
        %1063 = vmatpush2.bf16.msra.mxu0 0
        %1064 = vmatprep.subr.bf16.mxu0 0
        %1065 = vmatpush2.bf16.msra.mxu0 0
        %1066 = vmatprep.mubr.bf16.mxu0 0
        %1067 = vmatmul.mubr.bf16.gmra.mxu0 %v1029
        %v1068 = vpop.f32.mrf.mxu0
        %v1069 = vadd.f32 0.0, %v1068
        %v1070 = vpop.f32.mrf.mxu0
        %v1071 = vpop.f32.mrf.mxu0
        %v1072 = vpop.f32.mrf.mxu0
        %1073 = vdwg.mxu0
        %v1074 = vpack.c.bf16 %v1069, %v1069
        %v1075 = vld [vmem:[#allocation5 + $0x4] sm:$0xf]
        %v1077 = vsel %vm850, %v1074, 0
        %v1080 = vsel %vm916, %v1075, 0
        %1082 = vmatprep.subr.bf16.mxu0 0
        %1083 = vmatpush1.bf16.msra.mxu0 0
        %1084 = vmatprep.subr.bf16.mxu0 0
        %1085 = vmatpush1.bf16.msra.mxu0 0
        %1086 = vmatprep.subr.bf16.mxu0 0
        %1087 = vmatpush1.bf16.msra.mxu0 0
        %1088 = vmatprep.subr.bf16.mxu0 0
        %1089 = vmatpush1.bf16.msra.mxu0 0
        %1090 = vmatprep.subr.bf16.mxu0 0
        %1091 = vmatpush1.bf16.msra.mxu0 0
        %1092 = vmatprep.subr.bf16.mxu0 0
        %1093 = vmatpush1.bf16.msra.mxu0 0
        %1094 = vmatprep.subr.bf16.mxu0 0
        %1095 = vmatpush1.bf16.msra.mxu0 0
        %1096 = vmatprep.subr.bf16.mxu0 0
        %1097 = vmatpush1.bf16.msra.mxu0 %v1080
        %1098 = vmatprep.subr.bf16.mxu0 0
        %1099 = vmatpush2.bf16.msra.mxu0 0
        %1100 = vmatprep.subr.bf16.mxu0 0
        %1101 = vmatpush2.bf16.msra.mxu0 0
        %1102 = vmatprep.subr.bf16.mxu0 0
        %1103 = vmatpush2.bf16.msra.mxu0 0
        %1104 = vmatprep.subr.bf16.mxu0 0
        %1105 = vmatpush2.bf16.msra.mxu0 0
        %1106 = vmatprep.subr.bf16.mxu0 0
        %1107 = vmatpush2.bf16.msra.mxu0 0
        %1108 = vmatprep.subr.bf16.mxu0 0
        %1109 = vmatpush2.bf16.msra.mxu0 0
        %1110 = vmatprep.subr.bf16.mxu0 0
        %1111 = vmatpush2.bf16.msra.mxu0 0
        %1112 = vmatprep.subr.bf16.mxu0 0
        %1113 = vmatpush2.bf16.msra.mxu0 0
        %1114 = vmatprep.mubr.bf16.mxu0 0
        %1115 = vmatmul.mubr.bf16.gmra.mxu0 %v1077
        %v1116 = vpop.f32.mrf.mxu0
        %v1117 = vadd.f32 0.0, %v1116
        %v1118 = vpop.f32.mrf.mxu0
        %v1119 = vpop.f32.mrf.mxu0
        %v1120 = vpop.f32.mrf.mxu0
        %1121 = vdwg.mxu0
        %v1123 = vsel %vm850, %v960, 0
        %v1126 = vsel %vm916, %v961, 0
        %1128 = vmatprep.subr.bf16.mxu0 0
        %1129 = vmatpush1.bf16.msra.mxu0 0
        %1130 = vmatprep.subr.bf16.mxu0 0
        %1131 = vmatpush1.bf16.msra.mxu0 0
        %1132 = vmatprep.subr.bf16.mxu0 0
        %1133 = vmatpush1.bf16.msra.mxu0 0
        %1134 = vmatprep.subr.bf16.mxu0 0
        %1135 = vmatpush1.bf16.msra.mxu0 0
        %1136 = vmatprep.subr.bf16.mxu0 0
        %1137 = vmatpush1.bf16.msra.mxu0 0
        %1138 = vmatprep.subr.bf16.mxu0 0
        %1139 = vmatpush1.bf16.msra.mxu0 0
        %1140 = vmatprep.subr.bf16.mxu0 0
        %1141 = vmatpush1.bf16.msra.mxu0 0
        %1142 = vmatprep.subr.bf16.mxu0 0
        %1143 = vmatpush1.bf16.msra.mxu0 %v1126
        %1144 = vmatprep.subr.bf16.mxu0 0
        %1145 = vmatpush2.bf16.msra.mxu0 0
        %1146 = vmatprep.subr.bf16.mxu0 0
        %1147 = vmatpush2.bf16.msra.mxu0 0
        %1148 = vmatprep.subr.bf16.mxu0 0
        %1149 = vmatpush2.bf16.msra.mxu0 0
        %1150 = vmatprep.subr.bf16.mxu0 0
        %1151 = vmatpush2.bf16.msra.mxu0 0
        %1152 = vmatprep.subr.bf16.mxu0 0
        %1153 = vmatpush2.bf16.msra.mxu0 0
        %1154 = vmatprep.subr.bf16.mxu0 0
        %1155 = vmatpush2.bf16.msra.mxu0 0
        %1156 = vmatprep.subr.bf16.mxu0 0
        %1157 = vmatpush2.bf16.msra.mxu0 0
        %1158 = vmatprep.subr.bf16.mxu0 0
        %1159 = vmatpush2.bf16.msra.mxu0 0
        %1160 = vmatprep.mubr.bf16.mxu0 0
        %1161 = vmatmul.mubr.bf16.gmra.mxu0 %v1123
        %v1162 = vpop.f32.mrf.mxu0
        %v1163 = vadd.f32 %v1117, %v1162
        %v1164 = vpop.f32.mrf.mxu0
        %v1165 = vpop.f32.mrf.mxu0
        %v1166 = vpop.f32.mrf.mxu0
        %1167 = vdwg.mxu0
        %1168 = vrot.lane.b32.xlu0 %v848, 112
        %v1169 = vpop.permute.xlu0 %1168
        %1170 = vrot.lane.b32.xlu0 %v849, 112
        %v1171 = vpop.permute.xlu0 %1170
        %v1173 = vsel %vm850, %v1169, 0
        %v1176 = vsel %vm850, %v1171, 0
        %1178 = vmatprep.subr.bf16.mxu0 0
        %1179 = vmatpush1.bf16.xpose.msra.mxu0 0
        %1180 = vmatprep.subr.bf16.mxu0 0
        %1181 = vmatpush1.bf16.xpose.msra.mxu0 0
        %1182 = vmatprep.subr.bf16.mxu0 0
        %1183 = vmatpush1.bf16.xpose.msra.mxu0 0
        %1184 = vmatprep.subr.bf16.mxu0 0
        %1185 = vmatpush1.bf16.xpose.msra.mxu0 0
        %1186 = vmatprep.subr.bf16.mxu0 0
        %1187 = vmatpush1.bf16.xpose.msra.mxu0 0
        %1188 = vmatprep.subr.bf16.mxu0 0
        %1189 = vmatpush1.bf16.xpose.msra.mxu0 0
        %1190 = vmatprep.subr.bf16.mxu0 0
        %1191 = vmatpush1.bf16.xpose.msra.mxu0 0
        %1192 = vmatprep.subr.bf16.mxu0 0
        %1193 = vmatpush1.bf16.xpose.msra.mxu0 %v1176
        %1194 = vmatprep.subr.bf16.mxu0 0
        %1195 = vmatpush2.bf16.xpose.msra.mxu0 0
        %1196 = vmatprep.subr.bf16.mxu0 0
        %1197 = vmatpush2.bf16.xpose.msra.mxu0 0
        %1198 = vmatprep.subr.bf16.mxu0 0
        %1199 = vmatpush2.bf16.xpose.msra.mxu0 0
        %1200 = vmatprep.subr.bf16.mxu0 0
        %1201 = vmatpush2.bf16.xpose.msra.mxu0 0
        %1202 = vmatprep.subr.bf16.mxu0 0
        %1203 = vmatpush2.bf16.xpose.msra.mxu0 0
        %1204 = vmatprep.subr.bf16.mxu0 0
        %1205 = vmatpush2.bf16.xpose.msra.mxu0 0
        %1206 = vmatprep.subr.bf16.mxu0 0
        %1207 = vmatpush2.bf16.xpose.msra.mxu0 0
        %1208 = vmatprep.subr.bf16.mxu0 0
        %1209 = vmatpush2.bf16.xpose.msra.mxu0 0
        %1210 = vmatprep.mubr.bf16.mxu0 0
        %1211 = vmatmul.mubr.bf16.gmra.mxu0 %v1173
        %v1212 = vpop.f32.mrf.mxu0
        %v1213 = vadd.f32 0.0, %v1212
        %v1214 = vpop.f32.mrf.mxu0
        %v1215 = vpop.f32.mrf.mxu0
        %v1216 = vpop.f32.mrf.mxu0
        %1217 = vdwg.mxu0
        %v1218 = vsel %vm847, %v1213, -1e+30
        %v1219 = vsel %vm850, %v1218, -inf
        %1220 = vmax.xlane.f32.xlu0 %v1219
        %v1221 = vpop.xlane.xlu0 %1220
        %v1222 = vsub.f32 %v1218, %v1221
        %v1223 = vmul.f32 %v1222, 1.442695
        %v1224 = vpow.pop %v1223
        %v1225 = vsel %vm850, %v1224, 0.0
        %1226 = vadd.xlane.f32.xlu0 %v1225
        %v1227 = vpop.xlane.xlu0 %1226
        %v1228 = vrcp.pop %v1227
        %v1229 = vmul.f32 %v1224, %v1228
        %v1230 = vpack.c.bf16 %v1229, %v1229
        %1231 = vrot.lane.b32.xlu0 %v849, 80
        %v1232 = vpop.permute.xlu0 %1231
        %v1234 = vsel %vm850, %v1230, 0
        %v1237 = vsel %vm916, %v1232, 0
        %1239 = vmatprep.subr.bf16.mxu0 0
        %1240 = vmatpush1.bf16.msra.mxu0 0
        %1241 = vmatprep.subr.bf16.mxu0 0
        %1242 = vmatpush1.bf16.msra.mxu0 0
        %1243 = vmatprep.subr.bf16.mxu0 0
        %1244 = vmatpush1.bf16.msra.mxu0 0
        %1245 = vmatprep.subr.bf16.mxu0 0
        %1246 = vmatpush1.bf16.msra.mxu0 0
        %1247 = vmatprep.subr.bf16.mxu0 0
        %1248 = vmatpush1.bf16.msra.mxu0 0
        %1249 = vmatprep.subr.bf16.mxu0 0
        %1250 = vmatpush1.bf16.msra.mxu0 0
        %1251 = vmatprep.subr.bf16.mxu0 0
        %1252 = vmatpush1.bf16.msra.mxu0 0
        %1253 = vmatprep.subr.bf16.mxu0 0
        %1254 = vmatpush1.bf16.msra.mxu0 %v1237
        %1255 = vmatprep.subr.bf16.mxu0 0
        %1256 = vmatpush2.bf16.msra.mxu0 0
        %1257 = vmatprep.subr.bf16.mxu0 0
        %1258 = vmatpush2.bf16.msra.mxu0 0
        %1259 = vmatprep.subr.bf16.mxu0 0
        %1260 = vmatpush2.bf16.msra.mxu0 0
        %1261 = vmatprep.subr.bf16.mxu0 0
        %1262 = vmatpush2.bf16.msra.mxu0 0
        %1263 = vmatprep.subr.bf16.mxu0 0
        %1264 = vmatpush2.bf16.msra.mxu0 0
        %1265 = vmatprep.subr.bf16.mxu0 0
        %1266 = vmatpush2.bf16.msra.mxu0 0
        %1267 = vmatprep.subr.bf16.mxu0 0
        %1268 = vmatpush2.bf16.msra.mxu0 0
        %1269 = vmatprep.subr.bf16.mxu0 0
        %1270 = vmatpush2.bf16.msra.mxu0 0
        %1271 = vmatprep.mubr.bf16.mxu0 0
        %1272 = vmatmul.mubr.bf16.gmra.mxu0 %v1234
        %v1273 = vpop.f32.mrf.mxu0
        %v1274 = vadd.f32 0.0, %v1273
        %v1275 = vpop.f32.mrf.mxu0
        %v1276 = vpop.f32.mrf.mxu0
        %v1277 = vpop.f32.mrf.mxu0
        %1278 = vdwg.mxu0
        %v1279 = vpack.c.bf16 %v1274, %v1274
        %v1280 = vld [vmem:[#allocation5 + $0x8] sm:$0xf]
        %v1282 = vsel %vm850, %v1279, 0
        %v1285 = vsel %vm916, %v1280, 0
        %1287 = vmatprep.subr.bf16.mxu0 0
        %1288 = vmatpush1.bf16.msra.mxu0 0
        %1289 = vmatprep.subr.bf16.mxu0 0
        %1290 = vmatpush1.bf16.msra.mxu0 0
        %1291 = vmatprep.subr.bf16.mxu0 0
        %1292 = vmatpush1.bf16.msra.mxu0 0
        %1293 = vmatprep.subr.bf16.mxu0 0
        %1294 = vmatpush1.bf16.msra.mxu0 0
        %1295 = vmatprep.subr.bf16.mxu0 0
        %1296 = vmatpush1.bf16.msra.mxu0 0
        %1297 = vmatprep.subr.bf16.mxu0 0
        %1298 = vmatpush1.bf16.msra.mxu0 0
        %1299 = vmatprep.subr.bf16.mxu0 0
        %1300 = vmatpush1.bf16.msra.mxu0 0
        %1301 = vmatprep.subr.bf16.mxu0 0
        %1302 = vmatpush1.bf16.msra.mxu0 %v1285
        %1303 = vmatprep.subr.bf16.mxu0 0
        %1304 = vmatpush2.bf16.msra.mxu0 0
        %1305 = vmatprep.subr.bf16.mxu0 0
        %1306 = vmatpush2.bf16.msra.mxu0 0
        %1307 = vmatprep.subr.bf16.mxu0 0
        %1308 = vmatpush2.bf16.msra.mxu0 0
        %1309 = vmatprep.subr.bf16.mxu0 0
        %1310 = vmatpush2.bf16.msra.mxu0 0
        %1311 = vmatprep.subr.bf16.mxu0 0
        %1312 = vmatpush2.bf16.msra.mxu0 0
        %1313 = vmatprep.subr.bf16.mxu0 0
        %1314 = vmatpush2.bf16.msra.mxu0 0
        %1315 = vmatprep.subr.bf16.mxu0 0
        %1316 = vmatpush2.bf16.msra.mxu0 0
        %1317 = vmatprep.subr.bf16.mxu0 0
        %1318 = vmatpush2.bf16.msra.mxu0 0
        %1319 = vmatprep.mubr.bf16.mxu0 0
        %1320 = vmatmul.mubr.bf16.gmra.mxu0 %v1282
        %v1321 = vpop.f32.mrf.mxu0
        %v1322 = vadd.f32 0.0, %v1321
        %v1323 = vpop.f32.mrf.mxu0
        %v1324 = vpop.f32.mrf.mxu0
        %v1325 = vpop.f32.mrf.mxu0
        %1326 = vdwg.mxu0
        %v1327 = vadd.f32 %v1163, %v1322
        %1328 = vrot.lane.b32.xlu0 %v848, 104
        %v1329 = vpop.permute.xlu0 %1328
        %1330 = vrot.lane.b32.xlu0 %v849, 104
        %v1331 = vpop.permute.xlu0 %1330
        %v1333 = vsel %vm850, %v1329, 0
        %v1336 = vsel %vm850, %v1331, 0
        %1338 = vmatprep.subr.bf16.mxu0 0
        %1339 = vmatpush1.bf16.xpose.msra.mxu0 0
        %1340 = vmatprep.subr.bf16.mxu0 0
        %1341 = vmatpush1.bf16.xpose.msra.mxu0 0
        %1342 = vmatprep.subr.bf16.mxu0 0
        %1343 = vmatpush1.bf16.xpose.msra.mxu0 0
        %1344 = vmatprep.subr.bf16.mxu0 0
        %1345 = vmatpush1.bf16.xpose.msra.mxu0 0
        %1346 = vmatprep.subr.bf16.mxu0 0
        %1347 = vmatpush1.bf16.xpose.msra.mxu0 0
        %1348 = vmatprep.subr.bf16.mxu0 0
        %1349 = vmatpush1.bf16.xpose.msra.mxu0 0
        %1350 = vmatprep.subr.bf16.mxu0 0
        %1351 = vmatpush1.bf16.xpose.msra.mxu0 0
        %1352 = vmatprep.subr.bf16.mxu0 0
        %1353 = vmatpush1.bf16.xpose.msra.mxu0 %v1336
        %1354 = vmatprep.subr.bf16.mxu0 0
        %1355 = vmatpush2.bf16.xpose.msra.mxu0 0
        %1356 = vmatprep.subr.bf16.mxu0 0
        %1357 = vmatpush2.bf16.xpose.msra.mxu0 0
        %1358 = vmatprep.subr.bf16.mxu0 0
        %1359 = vmatpush2.bf16.xpose.msra.mxu0 0
        %1360 = vmatprep.subr.bf16.mxu0 0
        %1361 = vmatpush2.bf16.xpose.msra.mxu0 0
        %1362 = vmatprep.subr.bf16.mxu0 0
        %1363 = vmatpush2.bf16.xpose.msra.mxu0 0
        %1364 = vmatprep.subr.bf16.mxu0 0
        %1365 = vmatpush2.bf16.xpose.msra.mxu0 0
        %1366 = vmatprep.subr.bf16.mxu0 0
        %1367 = vmatpush2.bf16.xpose.msra.mxu0 0
        %1368 = vmatprep.subr.bf16.mxu0 0
        %1369 = vmatpush2.bf16.xpose.msra.mxu0 0
        %1370 = vmatprep.mubr.bf16.mxu0 0
        %1371 = vmatmul.mubr.bf16.gmra.mxu0 %v1333
        %v1372 = vpop.f32.mrf.mxu0
        %v1373 = vadd.f32 0.0, %v1372
        %v1374 = vpop.f32.mrf.mxu0
        %v1375 = vpop.f32.mrf.mxu0
        %v1376 = vpop.f32.mrf.mxu0
        %1377 = vdwg.mxu0
        %v1378 = vsel %vm847, %v1373, -1e+30
        %v1379 = vsel %vm850, %v1378, -inf
        %1380 = vmax.xlane.f32.xlu0 %v1379
        %v1381 = vpop.xlane.xlu0 %1380
        %v1382 = vsub.f32 %v1378, %v1381
        %v1383 = vmul.f32 %v1382, 1.442695
        %v1384 = vpow.pop %v1383
        %v1385 = vsel %vm850, %v1384, 0.0
        %1386 = vadd.xlane.f32.xlu0 %v1385
        %v1387 = vpop.xlane.xlu0 %1386
        %v1388 = vrcp.pop %v1387
        %v1389 = vmul.f32 %v1384, %v1388
        %v1390 = vpack.c.bf16 %v1389, %v1389
        %1391 = vrot.lane.b32.xlu0 %v849, 72
        %v1392 = vpop.permute.xlu0 %1391
        %v1394 = vsel %vm850, %v1390, 0
        %v1397 = vsel %vm916, %v1392, 0
        %1399 = vmatprep.subr.bf16.mxu0 0
        %1400 = vmatpush1.bf16.msra.mxu0 0
        %1401 = vmatprep.subr.bf16.mxu0 0
        %1402 = vmatpush1.bf16.msra.mxu0 0
        %1403 = vmatprep.subr.bf16.mxu0 0
        %1404 = vmatpush1.bf16.msra.mxu0 0
        %1405 = vmatprep.subr.bf16.mxu0 0
        %1406 = vmatpush1.bf16.msra.mxu0 0
        %1407 = vmatprep.subr.bf16.mxu0 0
        %1408 = vmatpush1.bf16.msra.mxu0 0
        %1409 = vmatprep.subr.bf16.mxu0 0
        %1410 = vmatpush1.bf16.msra.mxu0 0
        %1411 = vmatprep.subr.bf16.mxu0 0
        %1412 = vmatpush1.bf16.msra.mxu0 0
        %1413 = vmatprep.subr.bf16.mxu0 0
        %1414 = vmatpush1.bf16.msra.mxu0 %v1397
        %1415 = vmatprep.subr.bf16.mxu0 0
        %1416 = vmatpush2.bf16.msra.mxu0 0
        %1417 = vmatprep.subr.bf16.mxu0 0
        %1418 = vmatpush2.bf16.msra.mxu0 0
        %1419 = vmatprep.subr.bf16.mxu0 0
        %1420 = vmatpush2.bf16.msra.mxu0 0
        %1421 = vmatprep.subr.bf16.mxu0 0
        %1422 = vmatpush2.bf16.msra.mxu0 0
        %1423 = vmatprep.subr.bf16.mxu0 0
        %1424 = vmatpush2.bf16.msra.mxu0 0
        %1425 = vmatprep.subr.bf16.mxu0 0
        %1426 = vmatpush2.bf16.msra.mxu0 0
        %1427 = vmatprep.subr.bf16.mxu0 0
        %1428 = vmatpush2.bf16.msra.mxu0 0
        %1429 = vmatprep.subr.bf16.mxu0 0
        %1430 = vmatpush2.bf16.msra.mxu0 0
        %1431 = vmatprep.mubr.bf16.mxu0 0
        %1432 = vmatmul.mubr.bf16.gmra.mxu0 %v1394
        %v1433 = vpop.f32.mrf.mxu0
        %v1434 = vadd.f32 0.0, %v1433
        %v1435 = vpop.f32.mrf.mxu0
        %v1436 = vpop.f32.mrf.mxu0
        %v1437 = vpop.f32.mrf.mxu0
        %1438 = vdwg.mxu0
        %v1439 = vpack.c.bf16 %v1434, %v1434
        %v1440 = vld [vmem:[#allocation5 + $0xc] sm:$0xf]
        %v1442 = vsel %vm850, %v1439, 0
        %v1445 = vsel %vm916, %v1440, 0
        %1447 = vmatprep.subr.bf16.mxu0 0
        %1448 = vmatpush1.bf16.msra.mxu0 0
        %1449 = vmatprep.subr.bf16.mxu0 0
        %1450 = vmatpush1.bf16.msra.mxu0 0
        %1451 = vmatprep.subr.bf16.mxu0 0
        %1452 = vmatpush1.bf16.msra.mxu0 0
        %1453 = vmatprep.subr.bf16.mxu0 0
        %1454 = vmatpush1.bf16.msra.mxu0 0
        %1455 = vmatprep.subr.bf16.mxu0 0
        %1456 = vmatpush1.bf16.msra.mxu0 0
        %1457 = vmatprep.subr.bf16.mxu0 0
        %1458 = vmatpush1.bf16.msra.mxu0 0
        %1459 = vmatprep.subr.bf16.mxu0 0
        %1460 = vmatpush1.bf16.msra.mxu0 0
        %1461 = vmatprep.subr.bf16.mxu0 0
        %1462 = vmatpush1.bf16.msra.mxu0 %v1445
        %1463 = vmatprep.subr.bf16.mxu0 0
        %1464 = vmatpush2.bf16.msra.mxu0 0
        %1465 = vmatprep.subr.bf16.mxu0 0
        %1466 = vmatpush2.bf16.msra.mxu0 0
        %1467 = vmatprep.subr.bf16.mxu0 0
        %1468 = vmatpush2.bf16.msra.mxu0 0
        %1469 = vmatprep.subr.bf16.mxu0 0
        %1470 = vmatpush2.bf16.msra.mxu0 0
        %1471 = vmatprep.subr.bf16.mxu0 0
        %1472 = vmatpush2.bf16.msra.mxu0 0
        %1473 = vmatprep.subr.bf16.mxu0 0
        %1474 = vmatpush2.bf16.msra.mxu0 0
        %1475 = vmatprep.subr.bf16.mxu0 0
        %1476 = vmatpush2.bf16.msra.mxu0 0
        %1477 = vmatprep.subr.bf16.mxu0 0
        %1478 = vmatpush2.bf16.msra.mxu0 0
        %1479 = vmatprep.mubr.bf16.mxu0 0
        %1480 = vmatmul.mubr.bf16.gmra.mxu0 %v1442
        %v1481 = vpop.f32.mrf.mxu0
        %v1482 = vadd.f32 0.0, %v1481
        %v1483 = vpop.f32.mrf.mxu0
        %v1484 = vpop.f32.mrf.mxu0
        %v1485 = vpop.f32.mrf.mxu0
        %1486 = vdwg.mxu0
        %v1487 = vadd.f32 %v1327, %v1482
        %v1488 = vld [vmem:[%s9] sm:$0x1]
        %v1490 = vlaneseq
        %v1491 = vshrl.u32 %v1490, 7
        %v1492 = vsub.s32 0, %v1491
        %v1493 = vrot.slane %v1488, %v1492
        %v1495 = vadd.f32 %v1487, %v1493
        %v1496 = vpack.c.bf16 %v659, %v659
        %v1497 = vld [vmem:[#allocation7] sm:$0xf]
        %v1498 = vld [vmem:[#allocation7 + $0x4] sm:$0xf]
        %v1499 = vld [vmem:[#allocation7 + $0x8] sm:$0xf]
        %v1500 = vld [vmem:[#allocation7 + $0xc] sm:$0xf]
        %v1501 = vld [vmem:[%s11] sm:$0x1]
        %v1503 = vlaneseq
        %v1504 = vshrl.u32 %v1503, 7
        %v1505 = vsub.s32 0, %v1504
        %v1506 = vrot.slane %v1501, %v1505
        %v1512 = vunpack.c.l.b16 %v1497
        %v1513 = vunpack.c.l.b16 %v1498
        %v1514 = vunpack.c.l.b16 %v1499
        %v1515 = vunpack.c.l.b16 %v1500
        %v1516 = vpack.c.b16 %v1513, %v1512
        %v1517 = vpack.c.b16 %v1515, %v1514
        %v1521 = vsel %vm663, %v1496, 0
        %1523 = vmatprep.subr.bf16.mxu0 0
        %1524 = vmatpush1.bf16.msra.mxu0 0
        %1525 = vmatprep.subr.bf16.mxu0 0
        %1526 = vmatpush1.bf16.msra.mxu0 0
        %1527 = vmatprep.subr.bf16.mxu0 0
        %1528 = vmatpush1.bf16.msra.mxu0 0
        %1529 = vmatprep.subr.bf16.mxu0 0
        %1530 = vmatpush1.bf16.msra.mxu0 0
        %1531 = vmatprep.subr.bf16.mxu0 0
        %1532 = vmatpush1.bf16.msra.mxu0 0
        %1533 = vmatprep.subr.bf16.mxu0 0
        %1534 = vmatpush1.bf16.msra.mxu0 0
        %1535 = vmatprep.subr.bf16.mxu0 0
        %1536 = vmatpush1.bf16.msra.mxu0 %v1517
        %1537 = vmatprep.subr.bf16.mxu0 0
        %1538 = vmatpush1.bf16.msra.mxu0 %v1516
        %1539 = vmatprep.subr.bf16.mxu0 0
        %1540 = vmatpush2.bf16.msra.mxu0 0
        %1541 = vmatprep.subr.bf16.mxu0 0
        %1542 = vmatpush2.bf16.msra.mxu0 0
        %1543 = vmatprep.subr.bf16.mxu0 0
        %1544 = vmatpush2.bf16.msra.mxu0 0
        %1545 = vmatprep.subr.bf16.mxu0 0
        %1546 = vmatpush2.bf16.msra.mxu0 0
        %1547 = vmatprep.subr.bf16.mxu0 0
        %1548 = vmatpush2.bf16.msra.mxu0 0
        %1549 = vmatprep.subr.bf16.mxu0 0
        %1550 = vmatpush2.bf16.msra.mxu0 0
        %1551 = vmatprep.subr.bf16.mxu0 0
        %1552 = vmatpush2.bf16.msra.mxu0 0
        %1553 = vmatprep.subr.bf16.mxu0 0
        %1554 = vmatpush2.bf16.msra.mxu0 0
        %1555 = vmatprep.mubr.bf16.mxu0 0
        %1556 = vmatmul.mubr.bf16.gmra.mxu0 %v1521
        %v1557 = vpop.f32.mrf.mxu0
        %v1558 = vadd.f32 %v1506, %v1557
        %v1559 = vpop.f32.mrf.mxu0
        %v1560 = vpop.f32.mrf.mxu0
        %v1561 = vpop.f32.mrf.mxu0
        %1562 = vdwg.mxu0
        %v1563 = vxor.u32 %v1558, 2147483648
        %v1564 = vmul.f32 %v1563, 1.442695
        %v1565 = vpow.pop %v1564
        %v1566 = vadd.f32 %v1565, 1.0
        %v1567 = vrcp.pop %v1566
        %v1568 = vmul.f32 1.0, %v1567
        %v1569 = vsub.f32 %v1495, %v659
        %v1570 = vmul.f32 %v1568, %v1569
        %v1571 = vadd.f32 %v659, %v1570
        %v1572 = vld [vmem:[%s12] sm:$0x1]
        %v1573 = vld [vmem:[%s13] sm:$0x1]
        %v1574 = vsel %vm663, %v1571, 0.0
        %1575 = vadd.xlane.f32.xlu0 %v1574
        %v1576 = vpop.xlane.xlu0 %1575
        %v1577 = vmul.f32 %v1576, %v667
        %v1578 = vsub.f32 %v1571, %v1577
        %v1579 = vmul.f32 %v1578, %v1578
        %v1580 = vsel %vm663, %v1579, 0.0
        %1581 = vadd.xlane.f32.xlu0 %v1580
        %v1582 = vpop.xlane.xlu0 %1581
        %v1583 = vmul.f32 %v1582, %v667
        %v1584 = vadd.f32 %v1583, 1e-05
        %v1585 = vrsqrt.pop %v1584
        %v1586 = vmul.f32 %v1578, %v1585
        %v1588 = vlaneseq
        %v1589 = vshrl.u32 %v1588, 7
        %v1590 = vsub.s32 0, %v1589
        %v1591 = vrot.slane %v1572, %v1590
        %v1593 = vmul.f32 %v1586, %v1591
        %v1595 = vlaneseq
        %v1596 = vshrl.u32 %v1595, 7
        %v1597 = vsub.s32 0, %v1596
        %v1598 = vrot.slane %v1573, %v1597
        %v1600 = vadd.f32 %v1593, %v1598
        %v1601 = vpack.c.bf16 %v1600, %v1600
        %v1602 = vld [vmem:[%s14] sm:$0xff]
        %v1603 = vld [vmem:[%s14 + $0x8] sm:$0xff]
        %v1604 = vld [vmem:[%s14 + $0x10] sm:$0xff]
        %v1605 = vld [vmem:[%s14 + $0x18] sm:$0xff]
        %v1606 = vld [vmem:[%s15] sm:$0x3]
        %v1608 = vlaneseq
        %v1609 = vshrl.u32 %v1608, 7
        %v1610 = vsub.s32 0, %v1609
        %v1611 = vrot.slane %v1606, %v1610
        %v1612 = vlaneseq
        %v1613 = vshrl.u32 %v1612, 7
        %v1614 = vsub.s32 1, %v1613
        %v1615 = vrot.slane %v1606, %v1614
        %v1622 = vunpack.c.l.b16 %v1602
        %v1623 = vunpack.c.h.b16 %v1602
        %v1624 = vunpack.c.l.b16 %v1603
        %v1625 = vunpack.c.h.b16 %v1603
        %v1626 = vunpack.c.l.b16 %v1604
        %v1627 = vunpack.c.h.b16 %v1604
        %v1628 = vunpack.c.l.b16 %v1605
        %v1629 = vunpack.c.h.b16 %v1605
        %v1630 = vpack.c.b16 %v1624, %v1622
        %v1631 = vpack.c.b16 %v1625, %v1623
        %v1632 = vpack.c.b16 %v1628, %v1626
        %v1633 = vpack.c.b16 %v1629, %v1627
        %v1639 = vsel %vm663, %v1601, 0
        %1641 = vmatprep.subr.bf16.mxu0 0
        %1642 = vmatpush1.bf16.msra.mxu0 0
        %1643 = vmatprep.subr.bf16.mxu0 0
        %1644 = vmatpush1.bf16.msra.mxu0 0
        %1645 = vmatprep.subr.bf16.mxu0 0
        %1646 = vmatpush1.bf16.msra.mxu0 0
        %1647 = vmatprep.subr.bf16.mxu0 0
        %1648 = vmatpush1.bf16.msra.mxu0 0
        %1649 = vmatprep.subr.bf16.mxu0 0
        %1650 = vmatpush1.bf16.msra.mxu0 0
        %1651 = vmatprep.subr.bf16.mxu0 0
        %1652 = vmatpush1.bf16.msra.mxu0 0
        %1653 = vmatprep.subr.bf16.mxu0 %v1633
        %1654 = vmatpush1.bf16.msra.mxu0 %v1632
        %1655 = vmatprep.subr.bf16.mxu0 %v1631
        %1656 = vmatpush1.bf16.msra.mxu0 %v1630
        %1657 = vmatprep.subr.bf16.mxu0 0
        %1658 = vmatpush2.bf16.msra.mxu0 0
        %1659 = vmatprep.subr.bf16.mxu0 0
        %1660 = vmatpush2.bf16.msra.mxu0 0
        %1661 = vmatprep.subr.bf16.mxu0 0
        %1662 = vmatpush2.bf16.msra.mxu0 0
        %1663 = vmatprep.subr.bf16.mxu0 0
        %1664 = vmatpush2.bf16.msra.mxu0 0
        %1665 = vmatprep.subr.bf16.mxu0 0
        %1666 = vmatpush2.bf16.msra.mxu0 0
        %1667 = vmatprep.subr.bf16.mxu0 0
        %1668 = vmatpush2.bf16.msra.mxu0 0
        %1669 = vmatprep.subr.bf16.mxu0 0
        %1670 = vmatpush2.bf16.msra.mxu0 0
        %1671 = vmatprep.subr.bf16.mxu0 0
        %1672 = vmatpush2.bf16.msra.mxu0 0
        %1673 = vmatprep.mubr.bf16.mxu0 0
        %1674 = vmatmul.mubr.bf16.gmra.mxu0 %v1639
        %v1675 = vpop.f32.mrf.mxu0
        %v1676 = vadd.f32 %v1611, %v1675
        %v1677 = vpop.f32.mrf.mxu0
        %v1678 = vadd.f32 %v1615, %v1677
        %v1679 = vpop.f32.mrf.mxu0
        %v1680 = vpop.f32.mrf.mxu0
        %1681 = vdwg.mxu0
        %v1682 = vxor.u32 %v1676, 2147483648
        %v1683 = vmul.f32 %v1682, 1.442695
        %v1684 = vpow.pop %v1683
        %v1685 = vadd.f32 %v1684, 1.0
        %v1686 = vrcp.pop %v1685
        %v1687 = vmul.f32 1.0, %v1686
        %v1688 = vmul.f32 %v1676, %v1687
        %v1689 = vmul.f32 %v1688, %v1678
        %v1690 = vpack.c.bf16 %v1689, %v1689
        %v1691 = vld [vmem:[%s16] sm:$0xf]
        %v1692 = vld [vmem:[%s16 + $0x4] sm:$0xf]
        %v1693 = vld [vmem:[%s16 + $0x8] sm:$0xf]
        %v1694 = vld [vmem:[%s16 + $0xc] sm:$0xf]
        %v1695 = vld [vmem:[%s16 + $0x10] sm:$0xf]
        %v1696 = vld [vmem:[%s16 + $0x14] sm:$0xf]
        %v1697 = vld [vmem:[%s16 + $0x18] sm:$0xf]
        %v1698 = vld [vmem:[%s16 + $0x1c] sm:$0xf]
        %v1699 = vld [vmem:[%s16 + $0x20] sm:$0xf]
        %v1700 = vld [vmem:[%s16 + $0x24] sm:$0xf]
        %v1701 = vld [vmem:[%s16 + $0x28] sm:$0xf]
        %v1702 = vld [vmem:[%s16 + $0x2c] sm:$0xf]
        %v1703 = vld [vmem:[%s16 + $0x30] sm:$0xf]
        %v1704 = vld [vmem:[%s16 + $0x34] sm:$0xf]
        %v1705 = vld [vmem:[%s16 + $0x38] sm:$0xf]
        %v1706 = vld [vmem:[%s16 + $0x3c] sm:$0xf]
        %v1707 = vld [vmem:[%s17] sm:$0x1]
        %v1709 = vlaneseq
        %v1710 = vshrl.u32 %v1709, 7
        %v1711 = vsub.s32 0, %v1710
        %v1712 = vrot.slane %v1707, %v1711
        %v1730 = vunpack.c.l.b16 %v1691
        %v1731 = vunpack.c.l.b16 %v1692
        %v1732 = vunpack.c.l.b16 %v1693
        %v1733 = vunpack.c.l.b16 %v1694
        %v1734 = vunpack.c.l.b16 %v1695
        %v1735 = vunpack.c.l.b16 %v1696
        %v1736 = vunpack.c.l.b16 %v1697
        %v1737 = vunpack.c.l.b16 %v1698
        %v1738 = vunpack.c.l.b16 %v1699
        %v1739 = vunpack.c.l.b16 %v1700
        %v1740 = vunpack.c.l.b16 %v1701
        %v1741 = vunpack.c.l.b16 %v1702
        %v1742 = vunpack.c.l.b16 %v1703
        %v1743 = vunpack.c.l.b16 %v1704
        %v1744 = vunpack.c.l.b16 %v1705
        %v1745 = vunpack.c.l.b16 %v1706
        %v1746 = vpack.c.b16 %v1731, %v1730
        %v1747 = vpack.c.b16 %v1733, %v1732
        %v1748 = vpack.c.b16 %v1735, %v1734
        %v1749 = vpack.c.b16 %v1737, %v1736
        %v1750 = vpack.c.b16 %v1739, %v1738
        %v1751 = vpack.c.b16 %v1741, %v1740
        %v1752 = vpack.c.b16 %v1743, %v1742
        %v1753 = vpack.c.b16 %v1745, %v1744
        %1762 = vmatprep.subr.bf16.mxu0 0
        %1763 = vmatpush1.bf16.msra.mxu0 %v1753
        %1764 = vmatprep.subr.bf16.mxu0 0
        %1765 = vmatpush1.bf16.msra.mxu0 %v1752
        %1766 = vmatprep.subr.bf16.mxu0 0
        %1767 = vmatpush1.bf16.msra.mxu0 %v1751
        %1768 = vmatprep.subr.bf16.mxu0 0
        %1769 = vmatpush1.bf16.msra.mxu0 %v1750
        %1770 = vmatprep.subr.bf16.mxu0 0
        %1771 = vmatpush1.bf16.msra.mxu0 %v1749
        %1772 = vmatprep.subr.bf16.mxu0 0
        %1773 = vmatpush1.bf16.msra.mxu0 %v1748
        %1774 = vmatprep.subr.bf16.mxu0 0
        %1775 = vmatpush1.bf16.msra.mxu0 %v1747
        %1776 = vmatprep.subr.bf16.mxu0 0
        %1777 = vmatpush1.bf16.msra.mxu0 %v1746
        %1778 = vmatprep.subr.bf16.mxu0 0
        %1779 = vmatpush2.bf16.msra.mxu0 0
        %1780 = vmatprep.subr.bf16.mxu0 0
        %1781 = vmatpush2.bf16.msra.mxu0 0
        %1782 = vmatprep.subr.bf16.mxu0 0
        %1783 = vmatpush2.bf16.msra.mxu0 0
        %1784 = vmatprep.subr.bf16.mxu0 0
        %1785 = vmatpush2.bf16.msra.mxu0 0
        %1786 = vmatprep.subr.bf16.mxu0 0
        %1787 = vmatpush2.bf16.msra.mxu0 0
        %1788 = vmatprep.subr.bf16.mxu0 0
        %1789 = vmatpush2.bf16.msra.mxu0 0
        %1790 = vmatprep.subr.bf16.mxu0 0
        %1791 = vmatpush2.bf16.msra.mxu0 0
        %1792 = vmatprep.subr.bf16.mxu0 0
        %1793 = vmatpush2.bf16.msra.mxu0 0
        %1794 = vmatprep.mubr.bf16.mxu0 0
        %1795 = vmatmul.mubr.bf16.gmra.mxu0 %v1690
        %v1796 = vpop.f32.mrf.mxu0
        %v1797 = vadd.f32 %v1712, %v1796
        %v1798 = vpop.f32.mrf.mxu0
        %v1799 = vpop.f32.mrf.mxu0
        %v1800 = vpop.f32.mrf.mxu0
        %1801 = vdwg.mxu0
        %v1802 = vadd.f32 %v1571, %v1797
        %1803 = vst.msk [vmem:[%s645] sm:$0xff] %vm663, %v1802
        %s1804 = sand.u32 %s446, 1
        %s1805 = scalar_lea.sflag [#allocation4], %s1804
        %s1806 = sand.u32 %s446, 1
        %s1807 = smul.addr %s1806, 8
        %s1808 = scalar_lea.vmem [#allocation8], %s1807
        // Predicated region
        $region105: #{tpu_custom_call.1} parent=91 // pred_check
          %p1809 = pneg %p456
        $region106: #{tpu_custom_call.1} parent=91 // pred_check_branch
          %1811 = sbr.rel (%p1809) target = $region108
        $region107: #{tpu_custom_call.1} parent=91 // pred_region
          %s1813 = ssub.s32 128, 128
          %1814 = vsyncadd %s1805, %s1813
          %s1815 = sadd.s32 %s39, %s38
          %s1816 = smul.addr %s1815, 128
          %s1817 = scalar_lea.hbm %s18, %s1816
          %s1819 = sshll.u32 %s1808, 4
          %s1820 = int_to_ptr.vmem [resolvable:$true] %s1819
          %1822 = dma.vmem_to_hbm [thread:$0]  %s1820, 128, %s1817, %s1805
        $region108: #{tpu_custom_call.1} parent=91 // pred_fallthru
          _
      $region92: #{tpu_custom_call.1} parent=5 // pred_fallthru
        _
      %p1823 = scmp.le.s32.totalorder 2, %s29
      // Predicated region
      $region109: #{tpu_custom_call.1} parent=5 // pred_check
        %p1824 = pneg %p1823
      $region110: #{tpu_custom_call.1} parent=5 // pred_check_branch
        %1826 = sbr.rel (%p1824) target = $region112
      $region111: #{tpu_custom_call.1} parent=5 // pred_region
        %s1827 = ssub.s32 %s29, 2
        // Predicated region
        $region113: #{tpu_custom_call.1} parent=111 // pred_check
          %p1828 = pneg %p462
        $region114: #{tpu_custom_call.1} parent=111 // pred_check_branch
          %1830 = sbr.rel (%p1828) target = $region116
        $region115: #{tpu_custom_call.1} parent=111 // pred_region
          %s1831 = sand.u32 %s447, 1
          %s1832 = scalar_lea.sflag [#allocation4], %s1831
          %s1833 = sand.u32 %s447, 1
          %s1834 = smul.addr %s1833, 8
          %s1835 = scalar_lea.vmem [#allocation8], %s1834
          %1836 = dma.done %s1832, 128
        $region116: #{tpu_custom_call.1} parent=111 // pred_fallthru
          _
      $region112: #{tpu_custom_call.1} parent=5 // pred_fallthru
        _
    $region6: #{tpu_custom_call.1} parent=1 // loop_footer
      %s33 = sadd.s32 1, %s29
    $region7: #{tpu_custom_call.1} parent=1 // loop_footer_branch
      %28 = sbr.rel target = $region3
    $region8: #{tpu_custom_call.1} parent=1 // loop_exit
      _
    %1837 = vsyncpa [#allocation3], 1
    %s1838 = scalar_lea.sflag [#allocation3], 1
    %1839 = vsyncpa %s1838, 1
    %1840 = vsyncpa [#allocation6], 1
    %1841 = vsyncpa [#allocation4], 1
    %s1842 = scalar_lea.sflag [#allocation4], 1
    %1843 = vsyncpa %s1842, 1

</llo_original>
